<compile_context>
chip_gen: v5e
topology: v5e:2x2
jax: 0.10.0
libtpu: 0.0.40
codegen_flags: <defaults>
</compile_context>

<pallas_src>
import functools
import math

import jax
import jax.numpy as jnp
from jax.experimental import pallas as pl
from jax.experimental.pallas import tpu as pltpu


# --------------------------------------------------------------------------- #
# Kernels
# --------------------------------------------------------------------------- #
def _sdpa_kernel_probs(q_ref, k_ref, v_ref, *rest, inv_temp, has_bias):
    """Full-Lk kernel that also materializes the attention probabilities."""
    if has_bias:
        bias_ref, out_ref, attn_ref = rest
    else:
        out_ref, attn_ref = rest

    q = q_ref[0, 0]          # [Tq, Dk]   (compute dtype, e.g. bf16)
    k = k_ref[0, 0]          # [Lk, Dk]
    v = v_ref[0, 0]          # [Lk, Dv]

    # (q / temperature) @ k^T : contraction on the last dims -> fused trans_b
    # MXU matmul (no XLU transpose), f32 accumulation.
    s = jax.lax.dot_general(
        q * inv_temp, k,
        dimension_numbers=(((1,), (1,)), ((), ())),
        preferred_element_type=jnp.float32)              # [Tq, Lk] f32

    if has_bias:
        # Additive bias: 0 (keep) / -1e9 (masked).  Single VALU pass.
        s = s + bias_ref[0, 0].astype(jnp.float32)

    # Numerically-stable softmax in f32.
    m = jnp.max(s, axis=-1, keepdims=True)
    e = jnp.exp(s - m)
    denom = jnp.sum(e, axis=-1, keepdims=True)
    # Exact reciprocal for the *stored* probabilities (rows sum to 1).
    probs = e * pl.reciprocal(denom)

    attn_ref[0, 0] = probs.astype(attn_ref.dtype)
    out_ref[0, 0] = jnp.dot(probs.astype(v.dtype), v,
                            preferred_element_type=jnp.float32
                            ).astype(out_ref.dtype)


def _sdpa_kernel_flash(q_ref, k_ref, v_ref, *rest, inv_temp, has_bias):
    """kv-tiled flash kernel (online softmax), no attn output, deferred norm."""
    if has_bias:
        bias_ref, out_ref, m_sc, l_sc, acc_sc = rest
    else:
        out_ref, m_sc, l_sc, acc_sc = rest

    ki = pl.program_id(3)

    @pl.when(ki == 0)
    def _():
        m_sc[...] = jnp.full(m_sc.shape, -jnp.inf, m_sc.dtype)
        l_sc[...] = jnp.zeros(l_sc.shape, l_sc.dtype)
        acc_sc[...] = jnp.zeros(acc_sc.shape, acc_sc.dtype)

    q = q_ref[0, 0]          # [Tq, Dk]
    k = k_ref[0, 0]          # [Tkv, Dk]
    v = v_ref[0, 0]          # [Tkv, Dv]

    s = jax.lax.dot_general(
        q * inv_temp, k,
        dimension_numbers=(((1,), (1,)), ((), ())),
        preferred_element_type=jnp.float32)              # [Tq, Tkv] f32
    if has_bias:
        s = s + bias_ref[0, 0].astype(jnp.float32)

    m_prev = m_sc[...]
    m_new = jnp.maximum(m_prev, jnp.max(s, axis=-1, keepdims=True))
    alpha = jnp.exp(m_prev - m_new)
    e = jnp.exp(s - m_new)
    l_sc[...] = alpha * l_sc[...] + jnp.sum(e, axis=-1, keepdims=True)
    acc_sc[...] = alpha * acc_sc[...] + jnp.dot(
        e.astype(v.dtype), v, preferred_element_type=jnp.float32)
    m_sc[...] = m_new

    @pl.when(ki == pl.num_programs(3) - 1)
    def _():
        # Deferred normalization: reciprocal-multiply over [Tq, Dv] only.
        out_ref[0, 0] = (acc_sc[...] * pl.reciprocal(l_sc[...], approx=True)
                         ).astype(out_ref.dtype)


# --------------------------------------------------------------------------- #
# Tiling / VMEM helpers
# --------------------------------------------------------------------------- #
def _round_up(x, m):
    return ((x + m - 1) // m) * m


def _vmem_limit_bytes():
    """~75% of the physical per-core VMEM (48 MiB on v7x, 96 MiB on v5e/v6e)."""
    try:
        cap = int(pltpu.get_tpu_info().vmem_capacity_bytes)
    except Exception:
        cap = 64 * 1024 * 1024        # conservative (v7x per-TC physical)
    return max(32 * 1024 * 1024, (cap * 3) // 4)


def _pick_q_tile(lq, footprint_fn, budget):
    """Largest q-tile (multiple of 16, MXU-friendly) whose footprint fits."""
    cap = _round_up(lq, 16)
    for t in (512, 256, 128, 64, 32, 16):
        if t <= cap and footprint_fn(t) <= budget:
            return t
    return 16


def _bias_index_map3(batch_varies, head_varies, rows_vary):
    def imap(b, h, qi):
        return (b if batch_varies else 0, h if head_varies else 0,
                qi if rows_vary else 0, 0)
    return imap


def _bias_index_map4(batch_varies, head_varies, rows_vary):
    def imap(b, h, qi, ki):
        return (b if batch_varies else 0, h if head_varies else 0,
                qi if rows_vary else 0, ki)
    return imap


# --------------------------------------------------------------------------- #
# Wrapper
# --------------------------------------------------------------------------- #
def scaled_dot_product_attention(q, k, v, mask=None, *, temperature=None,
                                 return_attn=True,
                                 attn_dtype=jnp.float32,
                                 compute_dtype=jnp.bfloat16,
                                 kv_tile=None):
    q = jnp.asarray(q)
    k = jnp.asarray(k)
    v = jnp.asarray(v)
    B, H, Lq, Dk = q.shape
    Lk, Dv = v.shape[2], v.shape[3]
    out_dtype = q.dtype
    if temperature is None:
        temperature = math.sqrt(Dk)
    inv_temp = 1.0 / float(temperature)

    compute_dtype = jnp.dtype(compute_dtype)
    qc, kc, vc = (x.astype(compute_dtype) for x in (q, k, v))

    # ---- mask -> compact additive bias (bf16, 0 / -1e9) -------------------- #
    has_bias = mask is not None
    if has_bias:
        m = jnp.asarray(mask)
        while m.ndim < 4:             # PyTorch-style broadcasting from the left
            m = m[None]
        mb, mh, mq, _ = m.shape
        bias = jnp.where(m == 0, jnp.float32(-1e9), jnp.float32(0.0)
                         ).astype(jnp.bfloat16)
    else:
        mb = mh = mq = 1
        bias = None
    bias_full_rows = has_bias and (mq != 1)

    cb = compute_dtype.itemsize
    ob = jnp.dtype(out_dtype).itemsize
    ab = jnp.dtype(attn_dtype).itemsize

    vmem_limit = _vmem_limit_bytes()
    budget = int(vmem_limit * 0.9)

    # ======================================================================= #
    # Path A: attention probabilities requested -> full-Lk kernel.
    # ======================================================================= #
    if return_attn:
        def footprint(tq):
            blk = (tq * Dk + Lk * (Dk + Dv)) * cb + tq * Dv * ob + tq * Lk * ab
            if has_bias:
                blk += ((tq if bias_full_rows else 1) * Lk) * 2
            return 2 * blk + 4 * tq * Lk * 4        # double-buffer + f32 temps

        tq = _pick_q_tile(Lq, footprint, budget)
        Lq_pad = _round_up(Lq, tq)
        if Lq_pad != Lq:
            qc = jnp.pad(qc, ((0, 0), (0, 0), (0, Lq_pad - Lq), (0, 0)))
            if bias_full_rows:
                bias = jnp.pad(bias, ((0, 0), (0, 0), (0, Lq_pad - Lq), (0, 0)))
        n_q = Lq_pad // tq

        in_specs = [
            pl.BlockSpec((1, 1, tq, Dk), lambda b, h, qi: (b, h, qi, 0)),
            pl.BlockSpec((1, 1, Lk, Dk), lambda b, h, qi: (b, h, 0, 0)),
            pl.BlockSpec((1, 1, Lk, Dv), lambda b, h, qi: (b, h, 0, 0)),
        ]
        inputs = [qc, kc, vc]
        if has_bias:
            in_specs.append(pl.BlockSpec(
                (1, 1, tq if bias_full_rows else 1, Lk),
                _bias_index_map3(mb == B, mh == H, bias_full_rows)))
            inputs.append(bias)

        kernel = functools.partial(_sdpa_kernel_probs,
                                   inv_temp=inv_temp, has_bias=has_bias)
        out, attn = pl.pallas_call(
            kernel,
            out_shape=(
                jax.ShapeDtypeStruct((B, H, Lq_pad, Dv), out_dtype),
                jax.ShapeDtypeStruct((B, H, Lq_pad, Lk), jnp.dtype(attn_dtype)),
            ),
            grid_spec=pltpu.PrefetchScalarGridSpec(
                num_scalar_prefetch=0,
                grid=(B, H, n_q),
                in_specs=in_specs,
                out_specs=[
                    pl.BlockSpec((1, 1, tq, Dv), lambda b, h, qi: (b, h, qi, 0)),
                    pl.BlockSpec((1, 1, tq, Lk), lambda b, h, qi: (b, h, qi, 0)),
                ]),
            compiler_params=pltpu.CompilerParams(
                dimension_semantics=("parallel", "parallel", "parallel"),
                vmem_limit_bytes=vmem_limit),
        )(*inputs)

        if Lq_pad != Lq:
            out = out[:, :, :Lq]
            attn = attn[:, :, :Lq]
        return out, attn

    # ======================================================================= #
    # Path B: no attn output -> flash-style kv-tiled online softmax.
    # ======================================================================= #
    def footprint(tq, tkv):
        blk = (tq * Dk + tkv * (Dk + Dv)) * cb + tq * Dv * ob
        if has_bias:
            blk += ((tq if bias_full_rows else 1) * tkv) * 2
        return 2 * blk + 4 * tq * tkv * 4 + tq * (Dv + 2) * 4   # + scratch

    tkv = None
    if (kv_tile is not None and Lk % int(kv_tile) == 0
            and (int(kv_tile) % 128 == 0 or int(kv_tile) == Lk)):
        tkv = int(kv_tile)
    if tkv is None:
        tkv = Lk
        probe_tq = min(256, _round_up(Lq, 16))
        if footprint(probe_tq, Lk) > budget:
            for t in (1024, 512, 256, 128):
                if Lk % t == 0 and footprint(probe_tq, t) <= budget:
                    tkv = t
                    break
    tq = _pick_q_tile(Lq, lambda t: footprint(t, tkv), budget)

    Lq_pad = _round_up(Lq, tq)
    if Lq_pad != Lq:
        qc = jnp.pad(qc, ((0, 0), (0, 0), (0, Lq_pad - Lq), (0, 0)))
        if bias_full_rows:
            bias = jnp.pad(bias, ((0, 0), (0, 0), (0, Lq_pad - Lq), (0, 0)))
    n_q = Lq_pad // tq
    n_kv = Lk // tkv

    in_specs = [
        pl.BlockSpec((1, 1, tq, Dk), lambda b, h, qi, ki: (b, h, qi, 0)),
        pl.BlockSpec((1, 1, tkv, Dk), lambda b, h, qi, ki: (b, h, ki, 0)),
        pl.BlockSpec((1, 1, tkv, Dv), lambda b, h, qi, ki: (b, h, ki, 0)),
    ]
    inputs = [qc, kc, vc]
    if has_bias:
        in_specs.append(pl.BlockSpec(
            (1, 1, tq if bias_full_rows else 1, tkv),
            _bias_index_map4(mb == B, mh == H, bias_full_rows)))
        inputs.append(bias)

    kernel = functools.partial(_sdpa_kernel_flash,
                               inv_temp=inv_temp, has_bias=has_bias)
    out = pl.pallas_call(
        kernel,
        out_shape=jax.ShapeDtypeStruct((B, H, Lq_pad, Dv), out_dtype),
        grid_spec=pltpu.PrefetchScalarGridSpec(
            num_scalar_prefetch=0,
            grid=(B, H, n_q, n_kv),
            in_specs=in_specs,
            out_specs=pl.BlockSpec((1, 1, tq, Dv),
                                   lambda b, h, qi, ki: (b, h, qi, 0)),
            scratch_shapes=[
                pltpu.VMEM((tq, 1), jnp.float32),     # running max
                pltpu.VMEM((tq, 1), jnp.float32),     # running denom
                pltpu.VMEM((tq, Dv), jnp.float32),    # output accumulator
            ]),
        compiler_params=pltpu.CompilerParams(
            dimension_semantics=("parallel", "parallel", "parallel", "arbitrary"),
            vmem_limit_bytes=vmem_limit),
    )(*inputs)

    if Lq_pad != Lq:
        out = out[:, :, :Lq]
    return out, None


# --------------------------------------------------------------------------- #
# Pure-JAX reference (mirrors the PyTorch module in eval mode)
# --------------------------------------------------------------------------- #
def sdpa_ref(q, k, v, mask, temperature):
    scores = jnp.einsum("bhqd,bhkd->bhqk", q / temperature, k)
    if mask is not None:
        scores = jnp.where(mask == 0, -1e9, scores)
    probs = jax.nn.softmax(scores, axis=-1)
    out = jnp.einsum("bhqk,bhkd->bhqd", probs, v)
    return out, probs


if __name__ == "__main__":
    B, H, L, Dk, Dv = 2, 2, 256, 64, 64
    temperature = math.sqrt(Dk)

    key = jax.random.PRNGKey(0)
    kq, kk, kv_ = jax.random.split(key, 3)
    q = jax.random.normal(kq, (B, H, L, Dk), jnp.float32)
    k = jax.random.normal(kk, (B, H, L, Dk), jnp.float32)
    v = jax.random.normal(kv_, (B, H, L, Dv), jnp.float32)

    # --- Test 1: key-padding mask [B,1,1,Lk] (compact bias), probs returned. ---
    key_valid = jnp.ones((B, 1, 1, L), jnp.float32).at[1, :, :, L - 32:].set(0.0)
    out, attn = scaled_dot_product_attention(q, k, v, key_valid,
                                             temperature=temperature,
                                             return_attn=True)
    out = jax.block_until_ready(out)
    attn = jax.block_until_ready(attn)
    ref_out, ref_attn = sdpa_ref(q, k, v, key_valid, temperature)
    # Tolerance accounts for bf16 matmul operands (f32 accumulation).
    assert jnp.allclose(out, ref_out, atol=2e-2, rtol=2e-2), (
        float(jnp.max(jnp.abs(out - ref_out))))
    assert jnp.allclose(attn, ref_attn, atol=2e-2, rtol=2e-2), (
        float(jnp.max(jnp.abs(attn - ref_attn))))

    # --- Test 2: causal full mask, no probs -> flash kv-tiled path. -----------
    causal = jnp.tril(jnp.ones((L, L), jnp.float32))[None, None]
    out2, attn2 = scaled_dot_product_attention(q, k, v, causal,
                                               temperature=temperature,
                                               return_attn=False,
                                               kv_tile=128)
    out2 = jax.block_until_ready(out2)
    ref_out2, _ = sdpa_ref(q, k, v, causal, temperature)
    assert attn2 is None
    assert jnp.allclose(out2, ref_out2, atol=2e-2, rtol=2e-2), (
        float(jnp.max(jnp.abs(out2 - ref_out2))))

    print("KERNEL_OK")
</pallas_src>

<mosaic_0001>
module attributes {stable_mosaic.version = 11 : i64} {
  func.func @_sdpa_kernel_probs(%arg0: i32, %arg1: i32, %arg2: i32, %arg3: memref<1x1x256x64xbf16, #tpu.memory_space<vmem>>, %arg4: memref<1x1x256x64xbf16, #tpu.memory_space<vmem>>, %arg5: memref<1x1x256x64xbf16, #tpu.memory_space<vmem>>, %arg6: memref<1x1x1x256xbf16, #tpu.memory_space<vmem>>, %arg7: memref<1x1x256x64xf32, #tpu.memory_space<vmem>>, %arg8: memref<1x1x256x256xf32, #tpu.memory_space<vmem>>) attributes {dimension_semantics = [#tpu.dimension_semantics<parallel>, #tpu.dimension_semantics<parallel>, #tpu.dimension_semantics<parallel>], iteration_bounds = array<i64: 2, 2, 1>, scalar_prefetch = 0 : i64, scratch_operands = 0 : i64, tpu.core_type = #tpu.core_type<tc>, window_params = [{transform_indices = @transform_0, window_bounds = array<i64: 1, 1, 256, 64>}, {transform_indices = @transform_1, window_bounds = array<i64: 1, 1, 256, 64>}, {transform_indices = @transform_2, window_bounds = array<i64: 1, 1, 256, 64>}, {transform_indices = @transform_3, window_bounds = array<i64: 1, 1, 1, 256>}, {transform_indices = @transform_4, window_bounds = array<i64: 1, 1, 256, 64>}, {transform_indices = @transform_5, window_bounds = array<i64: 1, 1, 256, 256>}]} {
    %c0 = arith.constant 0 : index
    %c0_0 = arith.constant 0 : index
    %c0_1 = arith.constant 0 : index
    %c0_2 = arith.constant 0 : index
    %0 = vector.load %arg3[%c0, %c0_0, %c0_1, %c0_2] : memref<1x1x256x64xbf16, #tpu.memory_space<vmem>>, vector<1x1x256x64xbf16>
    %1 = vector.shape_cast %0 : vector<1x1x256x64xbf16> to vector<256x64xbf16>
    %c0_3 = arith.constant 0 : index
    %c0_4 = arith.constant 0 : index
    %c0_5 = arith.constant 0 : index
    %c0_6 = arith.constant 0 : index
    %2 = vector.load %arg4[%c0_3, %c0_4, %c0_5, %c0_6] : memref<1x1x256x64xbf16, #tpu.memory_space<vmem>>, vector<1x1x256x64xbf16>
    %3 = vector.shape_cast %2 : vector<1x1x256x64xbf16> to vector<256x64xbf16>
    %c0_7 = arith.constant 0 : index
    %c0_8 = arith.constant 0 : index
    %c0_9 = arith.constant 0 : index
    %c0_10 = arith.constant 0 : index
    %4 = vector.load %arg5[%c0_7, %c0_8, %c0_9, %c0_10] : memref<1x1x256x64xbf16, #tpu.memory_space<vmem>>, vector<1x1x256x64xbf16>
    %5 = vector.shape_cast %4 : vector<1x1x256x64xbf16> to vector<256x64xbf16>
    %cst = arith.constant 1.250000e-01 : bf16
    %6 = vector.broadcast %cst : bf16 to vector<256x64xbf16>
    %7 = arith.mulf %1, %6 : vector<256x64xbf16>
    %cst_11 = arith.constant dense<0.000000e+00> : vector<256x256xf32>
    %8 = tpu.matmul %7, %3, %cst_11 {dimension_numbers = #tpu.dot_dimension_numbers<[1], [1], [0], [0], [0, 0, 1, 0], [], []>} : vector<256x64xbf16>, vector<256x64xbf16>, vector<256x256xf32> -> vector<256x256xf32>
    %c0_12 = arith.constant 0 : index
    %c0_13 = arith.constant 0 : index
    %c0_14 = arith.constant 0 : index
    %c0_15 = arith.constant 0 : index
    %9 = vector.load %arg6[%c0_12, %c0_13, %c0_14, %c0_15] : memref<1x1x1x256xbf16, #tpu.memory_space<vmem>>, vector<1x1x1x256xbf16>
    %10 = vector.shape_cast %9 : vector<1x1x1x256xbf16> to vector<1x256xbf16>
    %11 = arith.extf %10 : vector<1x256xbf16> to vector<1x256xf32>
    %12 = vector.broadcast %11 : vector<1x256xf32> to vector<256x256xf32>
    %13 = arith.addf %8, %12 : vector<256x256xf32>
    %cst_16 = arith.constant dense<0xFF800000> : vector<256xf32>
    %14 = vector.multi_reduction <maximumf>, %13, %cst_16 [1] : vector<256x256xf32> to vector<256xf32>
    %15 = vector.shape_cast %14 : vector<256xf32> to vector<256x1xf32>
    %16 = vector.broadcast %15 : vector<256x1xf32> to vector<256x256xf32>
    %17 = arith.subf %13, %16 : vector<256x256xf32>
    %18 = math.exp %17 : vector<256x256xf32>
    %cst_17 = arith.constant dense<0.000000e+00> : vector<256xf32>
    %19 = vector.multi_reduction <add>, %18, %cst_17 [1] : vector<256x256xf32> to vector<256xf32>
    %20 = vector.shape_cast %19 : vector<256xf32> to vector<256x1xf32>
    %21 = tpu.reciprocal %20 : vector<256x1xf32> -> vector<256x1xf32>
    %22 = vector.broadcast %21 : vector<256x1xf32> to vector<256x256xf32>
    %23 = arith.mulf %18, %22 : vector<256x256xf32>
    %c0_18 = arith.constant 0 : index
    %c0_19 = arith.constant 0 : index
    %c0_20 = arith.constant 0 : index
    %c0_21 = arith.constant 0 : index
    %24 = vector.load %arg8[%c0_18, %c0_19, %c0_20, %c0_21] : memref<1x1x256x256xf32, #tpu.memory_space<vmem>>, vector<1x1x256x256xf32>
    %25 = vector.shape_cast %24 : vector<1x1x256x256xf32> to vector<256x256xf32>
    %26 = vector.shape_cast %23 : vector<256x256xf32> to vector<1x1x256x256xf32>
    tpu.vector_store %arg8[%c0_18, %c0_19, %c0_20, %c0_21], %26 {strides = array<i32>} : memref<1x1x256x256xf32, #tpu.memory_space<vmem>>, vector<1x1x256x256xf32>,
    %27 = arith.truncf %23 : vector<256x256xf32> to vector<256x256xbf16>
    %cst_22 = arith.constant dense<0.000000e+00> : vector<256x64xf32>
    %28 = tpu.matmul %27, %5, %cst_22 {dimension_numbers = #tpu.dot_dimension_numbers<[1], [0], [0], [1], [0, 0, 1, 1], [], []>} : vector<256x256xbf16>, vector<256x64xbf16>, vector<256x64xf32> -> vector<256x64xf32>
    %c0_23 = arith.constant 0 : index
    %c0_24 = arith.constant 0 : index
    %c0_25 = arith.constant 0 : index
    %c0_26 = arith.constant 0 : index
    %29 = vector.load %arg7[%c0_23, %c0_24, %c0_25, %c0_26] : memref<1x1x256x64xf32, #tpu.memory_space<vmem>>, vector<1x1x256x64xf32>
    %30 = vector.shape_cast %29 : vector<1x1x256x64xf32> to vector<256x64xf32>
    %31 = vector.shape_cast %28 : vector<256x64xf32> to vector<1x1x256x64xf32>
    tpu.vector_store %arg7[%c0_23, %c0_24, %c0_25, %c0_26], %31 {strides = array<i32>} : memref<1x1x256x64xf32, #tpu.memory_space<vmem>>, vector<1x1x256x64xf32>,
    return
  }
  func.func @transform_0(%arg0: i32, %arg1: i32, %arg2: i32) -> (i32, i32, i32, i32) {
    %c0_i32 = arith.constant 0 : i32
    %c0_i32_0 = arith.constant 0 : i32
    return %arg0, %arg1, %arg2, %c0_i32 : i32, i32, i32, i32
  }
  func.func @transform_1(%arg0: i32, %arg1: i32, %arg2: i32) -> (i32, i32, i32, i32) {
    %c0_i32 = arith.constant 0 : i32
    %c0_i32_0 = arith.constant 0 : i32
    %c0_i32_1 = arith.constant 0 : i32
    return %arg0, %arg1, %c0_i32, %c0_i32_0 : i32, i32, i32, i32
  }
  func.func @transform_2(%arg0: i32, %arg1: i32, %arg2: i32) -> (i32, i32, i32, i32) {
    %c0_i32 = arith.constant 0 : i32
    %c0_i32_0 = arith.constant 0 : i32
    %c0_i32_1 = arith.constant 0 : i32
    return %arg0, %arg1, %c0_i32, %c0_i32_0 : i32, i32, i32, i32
  }
  func.func @transform_3(%arg0: i32, %arg1: i32, %arg2: i32) -> (i32, i32, i32, i32) {
    %c0_i32 = arith.constant 0 : i32
    %c0_i32_0 = arith.constant 0 : i32
    %c0_i32_1 = arith.constant 0 : i32
    %c0_i32_2 = arith.constant 0 : i32
    return %arg0, %c0_i32, %c0_i32_0, %c0_i32_1 : i32, i32, i32, i32
  }
  func.func @transform_4(%arg0: i32, %arg1: i32, %arg2: i32) -> (i32, i32, i32, i32) {
    %c0_i32 = arith.constant 0 : i32
    %c0_i32_0 = arith.constant 0 : i32
    return %arg0, %arg1, %arg2, %c0_i32 : i32, i32, i32, i32
  }
  func.func @transform_5(%arg0: i32, %arg1: i32, %arg2: i32) -> (i32, i32, i32, i32) {
    %c0_i32 = arith.constant 0 : i32
    %c0_i32_0 = arith.constant 0 : i32
    return %arg0, %arg1, %arg2, %c0_i32 : i32, i32, i32, i32
  }
}

</mosaic_0001>

<llo_original>
// kernel: tpu_custom_call.1
$region0: #{tpu_custom_call.1}
  #allocation0 [shape = 'u32[]', space=smem, size = 0x4, offset = 0x4, fixed_abs, tag = 'smem constant byte address 0x4 - core index']
  #allocation1 [shape = 'u32[72,128]{1,0:T(1,128)}', space=vmem, size = 0x9000, scoped, tag = 'internal scratch']
  %s0 = inlined_call_operand.vmem [shape: bf16[2,2,256,64], index: 0, kind: input, shape index: {}]
  %s1 = inlined_call_operand.vmem [shape: bf16[2,2,256,64], index: 1, kind: input, shape index: {}]
  %s2 = inlined_call_operand.vmem [shape: bf16[2,2,256,64], index: 2, kind: input, shape index: {}]
  %s3 = inlined_call_operand.vmem [shape: bf16[2,1,1,256], index: 3, kind: input, shape index: {}]
  %s4 = inlined_call_operand.vmem [shape: f32[2,2,256,64], index: 4, kind: output, shape index: {0}]
  %s5 = inlined_call_operand.hbm [shape: f32[2,2,256,256], index: 5, kind: output, shape index: {1}]
  %6 = xla_tuple %s4, %s5
  %s7 = sld [smem:[#allocation0]]
  $region57: #{tpu_custom_call.1} parent=0
    _
  %s9 = ssub.s32 1, %s7
  %s10 = scalar_select 0, %s9, %s7
  $region1: #{tpu_custom_call.1} parent=0
    #allocation2 [shape = 'u8[524288]{0}', space=vmem, size = 0x80000, scoped, tag = 'output window, operand 1']
    #allocation3 [shape = 's32[2]{0}', space=sflag, size = 0x8, scoped, tag = 'scoped memory for tpu_custom_call.1']
    %11 = vsyncpa [#allocation3], 0
    %s12 = scalar_lea.sflag [#allocation3], 1
    %13 = vsyncpa %s12, 0
    loop: start=0, step=1, limit=6
    $region2: #{tpu_custom_call.1} parent=1 // loop_pre_header
      _
    $region3: #{tpu_custom_call.1} parent=1 // loop_header
      %s15 = sphi 0, %s19
      %p16 = scmp.ge.s32.totalorder %s15, 6
      %s22 = sphi 0, %s41
      %s23 = sphi 0, %s37
      %s24 = sphi 0, %s33
      %s25 = sphi 0, %s22
      %s26 = sphi 0, %s23
      %s27 = sphi 0, %s24
      %s28 = sphi 0, %s25
      %s29 = sphi 0, %s26
      %s30 = sphi 0, %s27
      %s48 = sphi 0, %s50
      %s51 = sphi 0, %s48
      %s52 = sphi 0, %s51
      %s68 = sphi 0, %s52
      %s76 = sphi 0, %s78
      %s79 = sphi 0, %s76
      %s80 = sphi 0, %s79
      %s96 = sphi 0, %s80
      %s104 = sphi 0, %s106
      %s107 = sphi 0, %s104
      %s108 = sphi 0, %s107
      %s124 = sphi 0, %s108
      %s130 = sphi 0, %s132
      %s133 = sphi 0, %s130
      %s134 = sphi 0, %s133
      %s150 = sphi 0, %s134
      %s160 = sphi 0, %s162
      %s163 = sphi 0, %s160
      %s164 = sphi 0, %s163
      %s180 = sphi 0, %s164
      %s190 = sphi 0, %s192
      %s193 = sphi 0, %s190
      %s194 = sphi 0, %s193
      %s210 = sphi 0, %s194
    $region4: #{tpu_custom_call.1} parent=1 // loop_header_branch
      %18 = sbr.rel (%p16) target = $region8
    $region5: #{tpu_custom_call.1} parent=1 // loop_body
      %s20 = ssub.s32 %s15, 1
      %s21 = ssub.s32 %s15, 2
      %s31 = sadd.s32 1, %s24
      %p32 = scmp.ge.s32.totalorder %s31, 1
      %s33 = scalar_select %p32, 0, %s31
      %s34 = sadd.s32 1, %s23
      %s35 = scalar_select %p32, %s34, %s23
      %p36 = scmp.ge.s32.totalorder %s35, 2
      %s37 = scalar_select %p36, 0, %s35
      %s38 = sadd.s32 1, %s22
      %s39 = scalar_select %p36, %s38, %s22
      %p40 = scmp.ge.s32.totalorder %s39, 2
      %s41 = scalar_select %p40, 0, %s39
      %s42 = ssub.s32 %s22, %s41
      %s43 = ssub.s32 %s23, %s37
      %s44 = sor.u32 %s42, %s43
      %s45 = ssub.s32 %s24, %s33
      %s46 = sor.u32 %s44, %s45
      %p47 = scmp.eq.s32.totalorder %s46, 0
      %s49 = sadd.s32 %s48, 1
      %s50 = scalar_select %p47, %s48, %s49
      %p53 = pneg %p47
      %p54 = scmp.eq.s32.totalorder %s15, 3
      %p55 = por %p53, %p54
      %p56 = scmp.ne.s32.totalorder %s48, %s51
      %p57 = scmp.eq.s32.totalorder %s15, 0
      %p58 = por %p56, %p57
      %p59 = scmp.ne.s32.totalorder %s48, %s51
      %p60 = scmp.eq.s32.totalorder %s20, 3
      %p61 = por %p59, %p60
      %p62 = scmp.ne.s32.totalorder %s51, %s52
      %p63 = scmp.eq.s32.totalorder %s20, 0
      %p64 = por %p62, %p63
      %p65 = scmp.ne.s32.totalorder %s51, %s52
      %p66 = scmp.eq.s32.totalorder %s21, 3
      %p67 = por %p65, %p66
      %p69 = scmp.ne.s32.totalorder %s52, %s68
      %p70 = scmp.eq.s32.totalorder %s21, 0
      %p71 = por %p69, %p70
      %s72 = ssub.s32 %s22, %s41
      %s73 = ssub.s32 %s23, %s37
      %s74 = sor.u32 %s72, %s73
      %p75 = scmp.eq.s32.totalorder %s74, 0
      %s77 = sadd.s32 %s76, 1
      %s78 = scalar_select %p75, %s76, %s77
      %p81 = pneg %p75
      %p82 = scmp.eq.s32.totalorder %s15, 3
      %p83 = por %p81, %p82
      %p84 = scmp.ne.s32.totalorder %s76, %s79
      %p85 = scmp.eq.s32.totalorder %s15, 0
      %p86 = por %p84, %p85
      %p87 = scmp.ne.s32.totalorder %s76, %s79
      %p88 = scmp.eq.s32.totalorder %s20, 3
      %p89 = por %p87, %p88
      %p90 = scmp.ne.s32.totalorder %s79, %s80
      %p91 = scmp.eq.s32.totalorder %s20, 0
      %p92 = por %p90, %p91
      %p93 = scmp.ne.s32.totalorder %s79, %s80
      %p94 = scmp.eq.s32.totalorder %s21, 3
      %p95 = por %p93, %p94
      %p97 = scmp.ne.s32.totalorder %s80, %s96
      %p98 = scmp.eq.s32.totalorder %s21, 0
      %p99 = por %p97, %p98
      %s100 = ssub.s32 %s22, %s41
      %s101 = ssub.s32 %s23, %s37
      %s102 = sor.u32 %s100, %s101
      %p103 = scmp.eq.s32.totalorder %s102, 0
      %s105 = sadd.s32 %s104, 1
      %s106 = scalar_select %p103, %s104, %s105
      %p109 = pneg %p103
      %p110 = scmp.eq.s32.totalorder %s15, 3
      %p111 = por %p109, %p110
      %p112 = scmp.ne.s32.totalorder %s104, %s107
      %p113 = scmp.eq.s32.totalorder %s15, 0
      %p114 = por %p112, %p113
      %p115 = scmp.ne.s32.totalorder %s104, %s107
      %p116 = scmp.eq.s32.totalorder %s20, 3
      %p117 = por %p115, %p116
      %p118 = scmp.ne.s32.totalorder %s107, %s108
      %p119 = scmp.eq.s32.totalorder %s20, 0
      %p120 = por %p118, %p119
      %p121 = scmp.ne.s32.totalorder %s107, %s108
      %p122 = scmp.eq.s32.totalorder %s21, 3
      %p123 = por %p121, %p122
      %p125 = scmp.ne.s32.totalorder %s108, %s124
      %p126 = scmp.eq.s32.totalorder %s21, 0
      %p127 = por %p125, %p126
      %s128 = ssub.s32 %s22, %s41
      %p129 = scmp.eq.s32.totalorder %s128, 0
      %s131 = sadd.s32 %s130, 1
      %s132 = scalar_select %p129, %s130, %s131
      %p135 = pneg %p129
      %p136 = scmp.eq.s32.totalorder %s15, 3
      %p137 = por %p135, %p136
      %p138 = scmp.ne.s32.totalorder %s130, %s133
      %p139 = scmp.eq.s32.totalorder %s15, 0
      %p140 = por %p138, %p139
      %p141 = scmp.ne.s32.totalorder %s130, %s133
      %p142 = scmp.eq.s32.totalorder %s20, 3
      %p143 = por %p141, %p142
      %p144 = scmp.ne.s32.totalorder %s133, %s134
      %p145 = scmp.eq.s32.totalorder %s20, 0
      %p146 = por %p144, %p145
      %p147 = scmp.ne.s32.totalorder %s133, %s134
      %p148 = scmp.eq.s32.totalorder %s21, 3
      %p149 = por %p147, %p148
      %p151 = scmp.ne.s32.totalorder %s134, %s150
      %p152 = scmp.eq.s32.totalorder %s21, 0
      %p153 = por %p151, %p152
      %s154 = ssub.s32 %s22, %s41
      %s155 = ssub.s32 %s23, %s37
      %s156 = sor.u32 %s154, %s155
      %s157 = ssub.s32 %s24, %s33
      %s158 = sor.u32 %s156, %s157
      %p159 = scmp.eq.s32.totalorder %s158, 0
      %s161 = sadd.s32 %s160, 1
      %s162 = scalar_select %p159, %s160, %s161
      %p165 = pneg %p159
      %p166 = scmp.eq.s32.totalorder %s15, 3
      %p167 = por %p165, %p166
      %p168 = scmp.ne.s32.totalorder %s160, %s163
      %p169 = scmp.eq.s32.totalorder %s15, 0
      %p170 = por %p168, %p169
      %p171 = scmp.ne.s32.totalorder %s160, %s163
      %p172 = scmp.eq.s32.totalorder %s20, 3
      %p173 = por %p171, %p172
      %p174 = scmp.ne.s32.totalorder %s163, %s164
      %p175 = scmp.eq.s32.totalorder %s20, 0
      %p176 = por %p174, %p175
      %p177 = scmp.ne.s32.totalorder %s163, %s164
      %p178 = scmp.eq.s32.totalorder %s21, 3
      %p179 = por %p177, %p178
      %p181 = scmp.ne.s32.totalorder %s164, %s180
      %p182 = scmp.eq.s32.totalorder %s21, 0
      %p183 = por %p181, %p182
      %s184 = ssub.s32 %s22, %s41
      %s185 = ssub.s32 %s23, %s37
      %s186 = sor.u32 %s184, %s185
      %s187 = ssub.s32 %s24, %s33
      %s188 = sor.u32 %s186, %s187
      %p189 = scmp.eq.s32.totalorder %s188, 0
      %s191 = sadd.s32 %s190, 1
      %s192 = scalar_select %p189, %s190, %s191
      %p195 = pneg %p189
      %p196 = scmp.eq.s32.totalorder %s15, 3
      %p197 = por %p195, %p196
      %p198 = scmp.ne.s32.totalorder %s190, %s193
      %p199 = scmp.eq.s32.totalorder %s15, 0
      %p200 = por %p198, %p199
      %p201 = scmp.ne.s32.totalorder %s190, %s193
      %p202 = scmp.eq.s32.totalorder %s20, 3
      %p203 = por %p201, %p202
      %p204 = scmp.ne.s32.totalorder %s193, %s194
      %p205 = scmp.eq.s32.totalorder %s20, 0
      %p206 = por %p204, %p205
      %p207 = scmp.ne.s32.totalorder %s193, %s194
      %p208 = scmp.eq.s32.totalorder %s21, 3
      %p209 = por %p207, %p208
      %p211 = scmp.ne.s32.totalorder %s194, %s210
      %p212 = scmp.eq.s32.totalorder %s21, 0
      %p213 = por %p211, %p212
      %p214 = scmp.le.s32.totalorder 1, %s15
      %p215 = scmp.lt.s32.totalorder %s15, 5
      %p216 = pnand %p214, %p215
      %p217 = pneg %p216
      // Predicated region
      $region9: #{tpu_custom_call.1} parent=5 // pred_check
        _
      $region10: #{tpu_custom_call.1} parent=5 // pred_check_branch
        %219 = sbr.rel (%p216) target = $region12
      $region11: #{tpu_custom_call.1} parent=5 // pred_region
        %s220 = ssub.s32 %s15, 1
      $region12: #{tpu_custom_call.1} parent=5 // pred_fallthru
        _
      %p221 = scmp.lt.s32.totalorder %s15, 4
      // Predicated region
      $region13: #{tpu_custom_call.1} parent=5 // pred_check
        %p222 = pneg %p221
      $region14: #{tpu_custom_call.1} parent=5 // pred_check_branch
        %224 = sbr.rel (%p222) target = $region16
      $region15: #{tpu_custom_call.1} parent=5 // pred_region
        // Predicated region
        $region17: #{tpu_custom_call.1} parent=15 // pred_check
          %p225 = pneg %p58
        $region18: #{tpu_custom_call.1} parent=15 // pred_check_branch
          %227 = sbr.rel (%p225) target = $region20
        $region19: #{tpu_custom_call.1} parent=15 // pred_region
          %s228 = smul.u32 32, %s24
          %p229 = scmp.lt.s32.totalorder %s22, 1
          %s230 = scalar_select %p229, %s22, 1
          %p231 = scmp.lt.s32.totalorder %s23, 1
          %s232 = scalar_select %p231, %s23, 1
          %p233 = scmp.lt.s32.totalorder %s228, 31
          %s234 = scalar_select %p233, %s228, 31
          %s235 = smul.addr %s232, 32
          %s236 = sadd.s32 %s234, %s235
          %s237 = smul.addr %s230, 64
          %s238 = sadd.s32 %s236, %s237
          %s239 = smul.addr %s238, 4
          %s240 = scalar_lea.vmem %s0, %s239
          %s241 = smul.u32 32, %s24
        $region20: #{tpu_custom_call.1} parent=15 // pred_fallthru
          _
        // Predicated region
        $region21: #{tpu_custom_call.1} parent=15 // pred_check
          %p242 = pneg %p86
        $region22: #{tpu_custom_call.1} parent=15 // pred_check_branch
          %244 = sbr.rel (%p242) target = $region24
        $region23: #{tpu_custom_call.1} parent=15 // pred_region
          %p245 = scmp.lt.s32.totalorder %s22, 1
          %s246 = scalar_select %p245, %s22, 1
          %p247 = scmp.lt.s32.totalorder %s23, 1
          %s248 = scalar_select %p247, %s23, 1
          %s249 = smul.addr %s248, 32
          %s250 = smul.addr %s246, 64
          %s251 = sadd.s32 %s249, %s250
          %s252 = smul.addr %s251, 4
          %s253 = scalar_lea.vmem %s1, %s252
        $region24: #{tpu_custom_call.1} parent=15 // pred_fallthru
          _
        // Predicated region
        $region25: #{tpu_custom_call.1} parent=15 // pred_check
          %p254 = pneg %p114
        $region26: #{tpu_custom_call.1} parent=15 // pred_check_branch
          %256 = sbr.rel (%p254) target = $region28
        $region27: #{tpu_custom_call.1} parent=15 // pred_region
          %p257 = scmp.lt.s32.totalorder %s22, 1
          %s258 = scalar_select %p257, %s22, 1
          %p259 = scmp.lt.s32.totalorder %s23, 1
          %s260 = scalar_select %p259, %s23, 1
          %s261 = smul.addr %s260, 32
          %s262 = smul.addr %s258, 64
          %s263 = sadd.s32 %s261, %s262
          %s264 = smul.addr %s263, 4
          %s265 = scalar_lea.vmem %s2, %s264
        $region28: #{tpu_custom_call.1} parent=15 // pred_fallthru
          _
        // Predicated region
        $region29: #{tpu_custom_call.1} parent=15 // pred_check
          %p266 = pneg %p140
        $region30: #{tpu_custom_call.1} parent=15 // pred_check_branch
          %268 = sbr.rel (%p266) target = $region32
        $region31: #{tpu_custom_call.1} parent=15 // pred_region
          %p269 = scmp.lt.s32.totalorder %s22, 1
          %s270 = scalar_select %p269, %s22, 1
          %s271 = smul.addr %s270, 2
          %s272 = scalar_lea.vmem %s3, %s271
        $region32: #{tpu_custom_call.1} parent=15 // pred_fallthru
          _
      $region16: #{tpu_custom_call.1} parent=5 // pred_fallthru
        _
      %p273 = scmp.le.s32.totalorder 1, %s15
      %p274 = scmp.lt.s32.totalorder %s15, 5
      %p275 = pnand %p273, %p274
      %p276 = pneg %p275
      // Predicated region
      $region33: #{tpu_custom_call.1} parent=5 // pred_check
        _
      $region34: #{tpu_custom_call.1} parent=5 // pred_check_branch
        %278 = sbr.rel (%p275) target = $region36
      $region35: #{tpu_custom_call.1} parent=5 // pred_region
        %s279 = ssub.s32 %s15, 1
        %s280 = smul.u32 32, %s27
        %p281 = scmp.lt.s32.totalorder %s25, 1
        %s282 = scalar_select %p281, %s25, 1
        %p283 = scmp.lt.s32.totalorder %s26, 1
        %s284 = scalar_select %p283, %s26, 1
        %p285 = scmp.lt.s32.totalorder %s280, 31
        %s286 = scalar_select %p285, %s280, 31
        %s287 = smul.addr %s284, 32
        %s288 = sadd.s32 %s286, %s287
        %s289 = smul.addr %s282, 64
        %s290 = sadd.s32 %s288, %s289
        %s291 = smul.addr %s290, 4
        %s292 = scalar_lea.vmem %s0, %s291
        %p293 = pneg %p64
        %p294 = pneg %p61
        %p295 = scmp.lt.s32.totalorder %s25, 1
        %s296 = scalar_select %p295, %s25, 1
        %p297 = scmp.lt.s32.totalorder %s26, 1
        %s298 = scalar_select %p297, %s26, 1
        %s299 = smul.addr %s298, 32
        %s300 = smul.addr %s296, 64
        %s301 = sadd.s32 %s299, %s300
        %s302 = smul.addr %s301, 4
        %s303 = scalar_lea.vmem %s1, %s302
        %p304 = pneg %p92
        %p305 = pneg %p89
        %p306 = scmp.lt.s32.totalorder %s25, 1
        %s307 = scalar_select %p306, %s25, 1
        %p308 = scmp.lt.s32.totalorder %s26, 1
        %s309 = scalar_select %p308, %s26, 1
        %s310 = smul.addr %s309, 32
        %s311 = smul.addr %s307, 64
        %s312 = sadd.s32 %s310, %s311
        %s313 = smul.addr %s312, 4
        %s314 = scalar_lea.vmem %s2, %s313
        %p315 = pneg %p120
        %p316 = pneg %p117
        %p317 = scmp.lt.s32.totalorder %s25, 1
        %s318 = scalar_select %p317, %s25, 1
        %s319 = smul.addr %s318, 2
        %s320 = scalar_lea.vmem %s3, %s319
        %p321 = pneg %p146
        %p322 = pneg %p143
        %p323 = pneg %p176
        %p324 = pneg %p173
        %s325 = smul.u32 32, %s27
        %p326 = scmp.lt.s32.totalorder %s25, 1
        %s327 = scalar_select %p326, %s25, 1
        %p328 = scmp.lt.s32.totalorder %s26, 1
        %s329 = scalar_select %p328, %s26, 1
        %p330 = scmp.lt.s32.totalorder %s325, 31
        %s331 = scalar_select %p330, %s325, 31
        %s332 = smul.addr %s329, 32
        %s333 = sadd.s32 %s331, %s332
        %s334 = smul.addr %s327, 64
        %s335 = sadd.s32 %s333, %s334
        %s336 = smul.addr %s335, 8
        %s337 = scalar_lea.vmem %s4, %s336
        %p338 = pneg %p206
        %p339 = pneg %p203
        %s340 = sand.u32 %s193, 1
        %s341 = scalar_lea.sflag [#allocation3], %s340
        %s342 = sand.u32 %s193, 1
        %s343 = smul.addr %s342, 512
        %s344 = scalar_lea.vmem [#allocation2], %s343
        %s345 = smul.u32 32, %s27
        %p346 = scmp.lt.s32.totalorder %s25, 1
        %s347 = scalar_select %p346, %s25, 1
        %p348 = scmp.lt.s32.totalorder %s26, 1
        %s349 = scalar_select %p348, %s26, 1
        %p350 = scmp.lt.s32.totalorder %s345, 31
        %s351 = scalar_select %p350, %s345, 31
        %s352 = smul.addr %s349, 32
        %s353 = sadd.s32 %s351, %s352
        %s354 = smul.addr %s347, 64
        %s355 = sadd.s32 %s353, %s354
        %s356 = smul.addr %s355, 4
        %s357 = scalar_lea.vmem %s0, %s356
        %s358 = smul.u32 32, %s27
        %p359 = scmp.lt.s32.totalorder %s25, 1
        %s360 = scalar_select %p359, %s25, 1
        %p361 = scmp.lt.s32.totalorder %s26, 1
        %s362 = scalar_select %p361, %s26, 1
        %s363 = smul.addr %s362, 32
        %s364 = smul.addr %s360, 64
        %s365 = sadd.s32 %s363, %s364
        %s366 = smul.addr %s365, 4
        %s367 = scalar_lea.vmem %s1, %s366
        %p368 = scmp.lt.s32.totalorder %s25, 1
        %s369 = scalar_select %p368, %s25, 1
        %p370 = scmp.lt.s32.totalorder %s26, 1
        %s371 = scalar_select %p370, %s26, 1
        %s372 = smul.addr %s371, 32
        %s373 = smul.addr %s369, 64
        %s374 = sadd.s32 %s372, %s373
        %s375 = smul.addr %s374, 4
        %s376 = scalar_lea.vmem %s2, %s375
        %p377 = scmp.lt.s32.totalorder %s25, 1
        %s378 = scalar_select %p377, %s25, 1
        %s379 = smul.addr %s378, 2
        %s380 = scalar_lea.vmem %s3, %s379
        %s381 = smul.u32 32, %s27
        %p382 = scmp.lt.s32.totalorder %s25, 1
        %s383 = scalar_select %p382, %s25, 1
        %p384 = scmp.lt.s32.totalorder %s26, 1
        %s385 = scalar_select %p384, %s26, 1
        %p386 = scmp.lt.s32.totalorder %s381, 31
        %s387 = scalar_select %p386, %s381, 31
        %s388 = smul.addr %s385, 32
        %s389 = sadd.s32 %s387, %s388
        %s390 = smul.addr %s383, 64
        %s391 = sadd.s32 %s389, %s390
        %s392 = smul.addr %s391, 8
        %s393 = scalar_lea.vmem %s4, %s392
        %s394 = smul.u32 32, %s27
        %s395 = smul.u32 32, %s27
        %v396 = vld [vmem:[%s357] sm:$0xf]
        %v397 = vld [vmem:[%s357 + $0x4] sm:$0xf]
        %v398 = vld [vmem:[%s357 + $0x8] sm:$0xf]
        %v399 = vld [vmem:[%s357 + $0xc] sm:$0xf]
        %v400 = vld [vmem:[%s357 + $0x10] sm:$0xf]
        %v401 = vld [vmem:[%s357 + $0x14] sm:$0xf]
        %v402 = vld [vmem:[%s357 + $0x18] sm:$0xf]
        %v403 = vld [vmem:[%s357 + $0x1c] sm:$0xf]
        %v404 = vld [vmem:[%s357 + $0x20] sm:$0xf]
        %v405 = vld [vmem:[%s357 + $0x24] sm:$0xf]
        %v406 = vld [vmem:[%s357 + $0x28] sm:$0xf]
        %v407 = vld [vmem:[%s357 + $0x2c] sm:$0xf]
        %v408 = vld [vmem:[%s357 + $0x30] sm:$0xf]
        %v409 = vld [vmem:[%s357 + $0x34] sm:$0xf]
        %v410 = vld [vmem:[%s357 + $0x38] sm:$0xf]
        %v411 = vld [vmem:[%s357 + $0x3c] sm:$0xf]
        %v412 = vld [vmem:[%s357 + $0x40] sm:$0xf]
        %v413 = vld [vmem:[%s357 + $0x44] sm:$0xf]
        %v414 = vld [vmem:[%s357 + $0x48] sm:$0xf]
        %v415 = vld [vmem:[%s357 + $0x4c] sm:$0xf]
        %v416 = vld [vmem:[%s357 + $0x50] sm:$0xf]
        %v417 = vld [vmem:[%s357 + $0x54] sm:$0xf]
        %v418 = vld [vmem:[%s357 + $0x58] sm:$0xf]
        %v419 = vld [vmem:[%s357 + $0x5c] sm:$0xf]
        %v420 = vld [vmem:[%s357 + $0x60] sm:$0xf]
        %v421 = vld [vmem:[%s357 + $0x64] sm:$0xf]
        %v422 = vld [vmem:[%s357 + $0x68] sm:$0xf]
        %v423 = vld [vmem:[%s357 + $0x6c] sm:$0xf]
        %v424 = vld [vmem:[%s357 + $0x70] sm:$0xf]
        %v425 = vld [vmem:[%s357 + $0x74] sm:$0xf]
        %v426 = vld [vmem:[%s357 + $0x78] sm:$0xf]
        %v427 = vld [vmem:[%s357 + $0x7c] sm:$0xf]
        %v428 = vld [vmem:[%s367] sm:$0xf]
        %v429 = vld [vmem:[%s367 + $0x4] sm:$0xf]
        %v430 = vld [vmem:[%s367 + $0x8] sm:$0xf]
        %v431 = vld [vmem:[%s367 + $0xc] sm:$0xf]
        %v432 = vld [vmem:[%s367 + $0x10] sm:$0xf]
        %v433 = vld [vmem:[%s367 + $0x14] sm:$0xf]
        %v434 = vld [vmem:[%s367 + $0x18] sm:$0xf]
        %v435 = vld [vmem:[%s367 + $0x1c] sm:$0xf]
        %v436 = vld [vmem:[%s367 + $0x20] sm:$0xf]
        %v437 = vld [vmem:[%s367 + $0x24] sm:$0xf]
        %v438 = vld [vmem:[%s367 + $0x28] sm:$0xf]
        %v439 = vld [vmem:[%s367 + $0x2c] sm:$0xf]
        %v440 = vld [vmem:[%s367 + $0x30] sm:$0xf]
        %v441 = vld [vmem:[%s367 + $0x34] sm:$0xf]
        %v442 = vld [vmem:[%s367 + $0x38] sm:$0xf]
        %v443 = vld [vmem:[%s367 + $0x3c] sm:$0xf]
        %v444 = vld [vmem:[%s367 + $0x40] sm:$0xf]
        %v445 = vld [vmem:[%s367 + $0x44] sm:$0xf]
        %v446 = vld [vmem:[%s367 + $0x48] sm:$0xf]
        %v447 = vld [vmem:[%s367 + $0x4c] sm:$0xf]
        %v448 = vld [vmem:[%s367 + $0x50] sm:$0xf]
        %v449 = vld [vmem:[%s367 + $0x54] sm:$0xf]
        %v450 = vld [vmem:[%s367 + $0x58] sm:$0xf]
        %v451 = vld [vmem:[%s367 + $0x5c] sm:$0xf]
        %v452 = vld [vmem:[%s367 + $0x60] sm:$0xf]
        %v453 = vld [vmem:[%s367 + $0x64] sm:$0xf]
        %v454 = vld [vmem:[%s367 + $0x68] sm:$0xf]
        %v455 = vld [vmem:[%s367 + $0x6c] sm:$0xf]
        %v456 = vld [vmem:[%s367 + $0x70] sm:$0xf]
        %v457 = vld [vmem:[%s367 + $0x74] sm:$0xf]
        %v458 = vld [vmem:[%s367 + $0x78] sm:$0xf]
        %v459 = vld [vmem:[%s367 + $0x7c] sm:$0xf]
        %v460 = vld [vmem:[%s376] sm:$0xf]
        %v461 = vld [vmem:[%s376 + $0x4] sm:$0xf]
        %v462 = vld [vmem:[%s376 + $0x8] sm:$0xf]
        %v463 = vld [vmem:[%s376 + $0xc] sm:$0xf]
        %v464 = vld [vmem:[%s376 + $0x10] sm:$0xf]
        %v465 = vld [vmem:[%s376 + $0x14] sm:$0xf]
        %v466 = vld [vmem:[%s376 + $0x18] sm:$0xf]
        %v467 = vld [vmem:[%s376 + $0x1c] sm:$0xf]
        %v468 = vld [vmem:[%s376 + $0x20] sm:$0xf]
        %v469 = vld [vmem:[%s376 + $0x24] sm:$0xf]
        %v470 = vld [vmem:[%s376 + $0x28] sm:$0xf]
        %v471 = vld [vmem:[%s376 + $0x2c] sm:$0xf]
        %v472 = vld [vmem:[%s376 + $0x30] sm:$0xf]
        %v473 = vld [vmem:[%s376 + $0x34] sm:$0xf]
        %v474 = vld [vmem:[%s376 + $0x38] sm:$0xf]
        %v475 = vld [vmem:[%s376 + $0x3c] sm:$0xf]
        %v476 = vld [vmem:[%s376 + $0x40] sm:$0xf]
        %v477 = vld [vmem:[%s376 + $0x44] sm:$0xf]
        %v478 = vld [vmem:[%s376 + $0x48] sm:$0xf]
        %v479 = vld [vmem:[%s376 + $0x4c] sm:$0xf]
        %v480 = vld [vmem:[%s376 + $0x50] sm:$0xf]
        %v481 = vld [vmem:[%s376 + $0x54] sm:$0xf]
        %v482 = vld [vmem:[%s376 + $0x58] sm:$0xf]
        %v483 = vld [vmem:[%s376 + $0x5c] sm:$0xf]
        %v484 = vld [vmem:[%s376 + $0x60] sm:$0xf]
        %v485 = vld [vmem:[%s376 + $0x64] sm:$0xf]
        %v486 = vld [vmem:[%s376 + $0x68] sm:$0xf]
        %v487 = vld [vmem:[%s376 + $0x6c] sm:$0xf]
        %v488 = vld [vmem:[%s376 + $0x70] sm:$0xf]
        %v489 = vld [vmem:[%s376 + $0x74] sm:$0xf]
        %v490 = vld [vmem:[%s376 + $0x78] sm:$0xf]
        %v491 = vld [vmem:[%s376 + $0x7c] sm:$0xf]
        %v492 = vunpack.c.l.bf16 %v396
        %v493 = vunpack.c.l.bf16 %v397
        %v494 = vunpack.c.l.bf16 %v398
        %v495 = vunpack.c.l.bf16 %v399
        %v496 = vunpack.c.l.bf16 %v400
        %v497 = vunpack.c.l.bf16 %v401
        %v498 = vunpack.c.l.bf16 %v402
        %v499 = vunpack.c.l.bf16 %v403
        %v500 = vunpack.c.l.bf16 %v404
        %v501 = vunpack.c.l.bf16 %v405
        %v502 = vunpack.c.l.bf16 %v406
        %v503 = vunpack.c.l.bf16 %v407
        %v504 = vunpack.c.l.bf16 %v408
        %v505 = vunpack.c.l.bf16 %v409
        %v506 = vunpack.c.l.bf16 %v410
        %v507 = vunpack.c.l.bf16 %v411
        %v508 = vunpack.c.l.bf16 %v412
        %v509 = vunpack.c.l.bf16 %v413
        %v510 = vunpack.c.l.bf16 %v414
        %v511 = vunpack.c.l.bf16 %v415
        %v512 = vunpack.c.l.bf16 %v416
        %v513 = vunpack.c.l.bf16 %v417
        %v514 = vunpack.c.l.bf16 %v418
        %v515 = vunpack.c.l.bf16 %v419
        %v516 = vunpack.c.l.bf16 %v420
        %v517 = vunpack.c.l.bf16 %v421
        %v518 = vunpack.c.l.bf16 %v422
        %v519 = vunpack.c.l.bf16 %v423
        %v520 = vunpack.c.l.bf16 %v424
        %v521 = vunpack.c.l.bf16 %v425
        %v522 = vunpack.c.l.bf16 %v426
        %v523 = vunpack.c.l.bf16 %v427
        %v524 = vmul.f32 %v492, 0.125
        %v525 = vmul.f32 %v493, 0.125
        %v526 = vmul.f32 %v494, 0.125
        %v527 = vmul.f32 %v495, 0.125
        %v528 = vmul.f32 %v496, 0.125
        %v529 = vmul.f32 %v497, 0.125
        %v530 = vmul.f32 %v498, 0.125
        %v531 = vmul.f32 %v499, 0.125
        %v532 = vmul.f32 %v500, 0.125
        %v533 = vmul.f32 %v501, 0.125
        %v534 = vmul.f32 %v502, 0.125
        %v535 = vmul.f32 %v503, 0.125
        %v536 = vmul.f32 %v504, 0.125
        %v537 = vmul.f32 %v505, 0.125
        %v538 = vmul.f32 %v506, 0.125
        %v539 = vmul.f32 %v507, 0.125
        %v540 = vmul.f32 %v508, 0.125
        %v541 = vmul.f32 %v509, 0.125
        %v542 = vmul.f32 %v510, 0.125
        %v543 = vmul.f32 %v511, 0.125
        %v544 = vmul.f32 %v512, 0.125
        %v545 = vmul.f32 %v513, 0.125
        %v546 = vmul.f32 %v514, 0.125
        %v547 = vmul.f32 %v515, 0.125
        %v548 = vmul.f32 %v516, 0.125
        %v549 = vmul.f32 %v517, 0.125
        %v550 = vmul.f32 %v518, 0.125
        %v551 = vmul.f32 %v519, 0.125
        %v552 = vmul.f32 %v520, 0.125
        %v553 = vmul.f32 %v521, 0.125
        %v554 = vmul.f32 %v522, 0.125
        %v555 = vmul.f32 %v523, 0.125
        %v556 = vpack.c.bf16 %v525, %v524
        %v557 = vpack.c.bf16 %v527, %v526
        %v558 = vpack.c.bf16 %v529, %v528
        %v559 = vpack.c.bf16 %v531, %v530
        %v560 = vpack.c.bf16 %v533, %v532
        %v561 = vpack.c.bf16 %v535, %v534
        %v562 = vpack.c.bf16 %v537, %v536
        %v563 = vpack.c.bf16 %v539, %v538
        %v564 = vpack.c.bf16 %v541, %v540
        %v565 = vpack.c.bf16 %v543, %v542
        %v566 = vpack.c.bf16 %v545, %v544
        %v567 = vpack.c.bf16 %v547, %v546
        %v568 = vpack.c.bf16 %v549, %v548
        %v569 = vpack.c.bf16 %v551, %v550
        %v570 = vpack.c.bf16 %v553, %v552
        %v571 = vpack.c.bf16 %v555, %v554
        %v572 = vld [vmem:[%s380] sm:$0x3]
        %v573 = vunpack.c.l.bf16 %v572
        %v575 = vperm.slane %v573, 0
        %v576 = vperm.slane %v573, 2
        %v579 = vperm.slane %v575, 0
        %v580 = vperm.slane %v576, 0
        %v613 = vunpack.c.l.b16 %v428
        %v614 = vunpack.c.l.b16 %v429
        %v615 = vunpack.c.l.b16 %v430
        %v616 = vunpack.c.l.b16 %v431
        %v617 = vunpack.c.l.b16 %v432
        %v618 = vunpack.c.l.b16 %v433
        %v619 = vunpack.c.l.b16 %v434
        %v620 = vunpack.c.l.b16 %v435
        %v621 = vunpack.c.l.b16 %v436
        %v622 = vunpack.c.l.b16 %v437
        %v623 = vunpack.c.l.b16 %v438
        %v624 = vunpack.c.l.b16 %v439
        %v625 = vunpack.c.l.b16 %v440
        %v626 = vunpack.c.l.b16 %v441
        %v627 = vunpack.c.l.b16 %v442
        %v628 = vunpack.c.l.b16 %v443
        %v629 = vunpack.c.l.b16 %v444
        %v630 = vunpack.c.l.b16 %v445
        %v631 = vunpack.c.l.b16 %v446
        %v632 = vunpack.c.l.b16 %v447
        %v633 = vunpack.c.l.b16 %v448
        %v634 = vunpack.c.l.b16 %v449
        %v635 = vunpack.c.l.b16 %v450
        %v636 = vunpack.c.l.b16 %v451
        %v637 = vunpack.c.l.b16 %v452
        %v638 = vunpack.c.l.b16 %v453
        %v639 = vunpack.c.l.b16 %v454
        %v640 = vunpack.c.l.b16 %v455
        %v641 = vunpack.c.l.b16 %v456
        %v642 = vunpack.c.l.b16 %v457
        %v643 = vunpack.c.l.b16 %v458
        %v644 = vunpack.c.l.b16 %v459
        %v645 = vpack.c.b16 %v614, %v613
        %v646 = vpack.c.b16 %v616, %v615
        %v647 = vpack.c.b16 %v618, %v617
        %v648 = vpack.c.b16 %v620, %v619
        %v649 = vpack.c.b16 %v622, %v621
        %v650 = vpack.c.b16 %v624, %v623
        %v651 = vpack.c.b16 %v626, %v625
        %v652 = vpack.c.b16 %v628, %v627
        %v653 = vpack.c.b16 %v630, %v629
        %v654 = vpack.c.b16 %v632, %v631
        %v655 = vpack.c.b16 %v634, %v633
        %v656 = vpack.c.b16 %v636, %v635
        %v657 = vpack.c.b16 %v638, %v637
        %v658 = vpack.c.b16 %v640, %v639
        %v659 = vpack.c.b16 %v642, %v641
        %v660 = vpack.c.b16 %v644, %v643
        %vm661 = vcmask 523264
        %v663 = vsel %vm661, %v556, 0
        %v666 = vsel %vm661, %v557, 0
        %v669 = vsel %vm661, %v558, 0
        %v672 = vsel %vm661, %v559, 0
        %v675 = vsel %vm661, %v560, 0
        %v678 = vsel %vm661, %v561, 0
        %v681 = vsel %vm661, %v562, 0
        %v684 = vsel %vm661, %v563, 0
        %v687 = vsel %vm661, %v564, 0
        %v690 = vsel %vm661, %v565, 0
        %v693 = vsel %vm661, %v566, 0
        %v696 = vsel %vm661, %v567, 0
        %v699 = vsel %vm661, %v568, 0
        %v702 = vsel %vm661, %v569, 0
        %v705 = vsel %vm661, %v570, 0
        %v708 = vsel %vm661, %v571, 0
        %v711 = vsel %vm661, %v645, 0
        %v714 = vsel %vm661, %v646, 0
        %v717 = vsel %vm661, %v647, 0
        %v720 = vsel %vm661, %v648, 0
        %v723 = vsel %vm661, %v649, 0
        %v726 = vsel %vm661, %v650, 0
        %v729 = vsel %vm661, %v651, 0
        %v732 = vsel %vm661, %v652, 0
        %v735 = vsel %vm661, %v653, 0
        %v738 = vsel %vm661, %v654, 0
        %v741 = vsel %vm661, %v655, 0
        %v744 = vsel %vm661, %v656, 0
        %v747 = vsel %vm661, %v657, 0
        %v750 = vsel %vm661, %v658, 0
        %v753 = vsel %vm661, %v659, 0
        %v756 = vsel %vm661, %v660, 0
        %758 = vmatpush.bf16.xpose.msra.mxu0 %v732
        %759 = vmatpush.bf16.xpose.msra.mxu0 %v729
        %760 = vmatpush.bf16.xpose.msra.mxu0 %v726
        %761 = vmatpush.bf16.xpose.msra.mxu0 %v723
        %762 = vmatpush.bf16.xpose.msra.mxu0 %v720
        %763 = vmatpush.bf16.xpose.msra.mxu0 %v717
        %764 = vmatpush.bf16.xpose.msra.mxu0 %v714
        %765 = vmatpush.bf16.xpose.msra.mxu0 %v711
        %766 = vmatmul.bf16.gmra.mxu0 %v663
        %v767 = vpop.f32.mrf.mxu0
        %v768 = vadd.f32 %v579, %v767
        %v769 = vpop.f32.mrf.mxu0
        %v770 = vadd.f32 %v579, %v769
        %771 = vmatmul.bf16.gmra.mxu0 %v666
        %v772 = vpop.f32.mrf.mxu0
        %v773 = vadd.f32 %v579, %v772
        %v774 = vpop.f32.mrf.mxu0
        %v775 = vadd.f32 %v579, %v774
        %776 = vmatmul.bf16.gmra.mxu0 %v669
        %v777 = vpop.f32.mrf.mxu0
        %v778 = vadd.f32 %v579, %v777
        %v779 = vpop.f32.mrf.mxu0
        %v780 = vadd.f32 %v579, %v779
        %781 = vmatmul.bf16.gmra.mxu0 %v672
        %v782 = vpop.f32.mrf.mxu0
        %v783 = vadd.f32 %v579, %v782
        %v784 = vpop.f32.mrf.mxu0
        %v785 = vadd.f32 %v579, %v784
        %786 = vmatmul.bf16.gmra.mxu0 %v675
        %v787 = vpop.f32.mrf.mxu0
        %v788 = vadd.f32 %v579, %v787
        %v789 = vpop.f32.mrf.mxu0
        %v790 = vadd.f32 %v579, %v789
        %791 = vmatmul.bf16.gmra.mxu0 %v678
        %v792 = vpop.f32.mrf.mxu0
        %v793 = vadd.f32 %v579, %v792
        %v794 = vpop.f32.mrf.mxu0
        %v795 = vadd.f32 %v579, %v794
        %796 = vmatmul.bf16.gmra.mxu0 %v681
        %v797 = vpop.f32.mrf.mxu0
        %v798 = vadd.f32 %v579, %v797
        %v799 = vpop.f32.mrf.mxu0
        %v800 = vadd.f32 %v579, %v799
        %801 = vmatmul.bf16.gmra.mxu0 %v684
        %v802 = vpop.f32.mrf.mxu0
        %v803 = vadd.f32 %v579, %v802
        %v804 = vpop.f32.mrf.mxu0
        %v805 = vadd.f32 %v579, %v804
        %806 = vmatmul.bf16.gmra.mxu0 %v687
        %v807 = vpop.f32.mrf.mxu0
        %v808 = vadd.f32 %v579, %v807
        %v809 = vpop.f32.mrf.mxu0
        %v810 = vadd.f32 %v579, %v809
        %811 = vmatmul.bf16.gmra.mxu0 %v690
        %v812 = vpop.f32.mrf.mxu0
        %v813 = vadd.f32 %v579, %v812
        %v814 = vpop.f32.mrf.mxu0
        %v815 = vadd.f32 %v579, %v814
        %816 = vmatmul.bf16.gmra.mxu0 %v693
        %v817 = vpop.f32.mrf.mxu0
        %v818 = vadd.f32 %v579, %v817
        %v819 = vpop.f32.mrf.mxu0
        %v820 = vadd.f32 %v579, %v819
        %821 = vmatmul.bf16.gmra.mxu0 %v696
        %v822 = vpop.f32.mrf.mxu0
        %v823 = vadd.f32 %v579, %v822
        %v824 = vpop.f32.mrf.mxu0
        %v825 = vadd.f32 %v579, %v824
        %826 = vmatmul.bf16.gmra.mxu0 %v699
        %v827 = vpop.f32.mrf.mxu0
        %v828 = vadd.f32 %v579, %v827
        %v829 = vpop.f32.mrf.mxu0
        %v830 = vadd.f32 %v579, %v829
        %831 = vmatmul.bf16.gmra.mxu0 %v702
        %v832 = vpop.f32.mrf.mxu0
        %v833 = vadd.f32 %v579, %v832
        %v834 = vpop.f32.mrf.mxu0
        %v835 = vadd.f32 %v579, %v834
        %836 = vmatmul.bf16.gmra.mxu0 %v705
        %v837 = vpop.f32.mrf.mxu0
        %v838 = vadd.f32 %v579, %v837
        %v839 = vpop.f32.mrf.mxu0
        %v840 = vadd.f32 %v579, %v839
        %841 = vmatmul.bf16.gmra.mxu0 %v708
        %v842 = vpop.f32.mrf.mxu0
        %v843 = vadd.f32 %v579, %v842
        %v844 = vpop.f32.mrf.mxu0
        %v845 = vadd.f32 %v579, %v844
        %846 = vdwg.mxu0
        %847 = vmatpush.bf16.xpose.msra.mxu0 %v756
        %848 = vmatpush.bf16.xpose.msra.mxu0 %v753
        %849 = vmatpush.bf16.xpose.msra.mxu0 %v750
        %850 = vmatpush.bf16.xpose.msra.mxu0 %v747
        %851 = vmatpush.bf16.xpose.msra.mxu0 %v744
        %852 = vmatpush.bf16.xpose.msra.mxu0 %v741
        %853 = vmatpush.bf16.xpose.msra.mxu0 %v738
        %854 = vmatpush.bf16.xpose.msra.mxu0 %v735
        %855 = vmatmul.bf16.gmra.mxu0 %v663
        %v856 = vpop.f32.mrf.mxu0
        %v857 = vadd.f32 %v580, %v856
        %v858 = vpop.f32.mrf.mxu0
        %v859 = vadd.f32 %v580, %v858
        %860 = vmatmul.bf16.gmra.mxu0 %v666
        %v861 = vpop.f32.mrf.mxu0
        %v862 = vadd.f32 %v580, %v861
        %v863 = vpop.f32.mrf.mxu0
        %v864 = vadd.f32 %v580, %v863
        %865 = vmatmul.bf16.gmra.mxu0 %v669
        %v866 = vpop.f32.mrf.mxu0
        %v867 = vadd.f32 %v580, %v866
        %v868 = vpop.f32.mrf.mxu0
        %v869 = vadd.f32 %v580, %v868
        %870 = vmatmul.bf16.gmra.mxu0 %v672
        %v871 = vpop.f32.mrf.mxu0
        %v872 = vadd.f32 %v580, %v871
        %v873 = vpop.f32.mrf.mxu0
        %v874 = vadd.f32 %v580, %v873
        %875 = vmatmul.bf16.gmra.mxu0 %v675
        %v876 = vpop.f32.mrf.mxu0
        %v877 = vadd.f32 %v580, %v876
        %v878 = vpop.f32.mrf.mxu0
        %v879 = vadd.f32 %v580, %v878
        %880 = vmatmul.bf16.gmra.mxu0 %v678
        %v881 = vpop.f32.mrf.mxu0
        %v882 = vadd.f32 %v580, %v881
        %v883 = vpop.f32.mrf.mxu0
        %v884 = vadd.f32 %v580, %v883
        %885 = vmatmul.bf16.gmra.mxu0 %v681
        %v886 = vpop.f32.mrf.mxu0
        %v887 = vadd.f32 %v580, %v886
        %v888 = vpop.f32.mrf.mxu0
        %v889 = vadd.f32 %v580, %v888
        %890 = vmatmul.bf16.gmra.mxu0 %v684
        %v891 = vpop.f32.mrf.mxu0
        %v892 = vadd.f32 %v580, %v891
        %v893 = vpop.f32.mrf.mxu0
        %v894 = vadd.f32 %v580, %v893
        %895 = vmatmul.bf16.gmra.mxu0 %v687
        %v896 = vpop.f32.mrf.mxu0
        %v897 = vadd.f32 %v580, %v896
        %v898 = vpop.f32.mrf.mxu0
        %v899 = vadd.f32 %v580, %v898
        %900 = vmatmul.bf16.gmra.mxu0 %v690
        %v901 = vpop.f32.mrf.mxu0
        %v902 = vadd.f32 %v580, %v901
        %v903 = vpop.f32.mrf.mxu0
        %v904 = vadd.f32 %v580, %v903
        %905 = vmatmul.bf16.gmra.mxu0 %v693
        %v906 = vpop.f32.mrf.mxu0
        %v907 = vadd.f32 %v580, %v906
        %v908 = vpop.f32.mrf.mxu0
        %v909 = vadd.f32 %v580, %v908
        %910 = vmatmul.bf16.gmra.mxu0 %v696
        %v911 = vpop.f32.mrf.mxu0
        %v912 = vadd.f32 %v580, %v911
        %v913 = vpop.f32.mrf.mxu0
        %v914 = vadd.f32 %v580, %v913
        %915 = vmatmul.bf16.gmra.mxu0 %v699
        %v916 = vpop.f32.mrf.mxu0
        %v917 = vadd.f32 %v580, %v916
        %v918 = vpop.f32.mrf.mxu0
        %v919 = vadd.f32 %v580, %v918
        %920 = vmatmul.bf16.gmra.mxu0 %v702
        %v921 = vpop.f32.mrf.mxu0
        %v922 = vadd.f32 %v580, %v921
        %v923 = vpop.f32.mrf.mxu0
        %v924 = vadd.f32 %v580, %v923
        %925 = vmatmul.bf16.gmra.mxu0 %v705
        %v926 = vpop.f32.mrf.mxu0
        %v927 = vadd.f32 %v580, %v926
        %v928 = vpop.f32.mrf.mxu0
        %v929 = vadd.f32 %v580, %v928
        %930 = vmatmul.bf16.gmra.mxu0 %v708
        %v931 = vpop.f32.mrf.mxu0
        %v932 = vadd.f32 %v580, %v931
        %v933 = vpop.f32.mrf.mxu0
        %v934 = vadd.f32 %v580, %v933
        %935 = vdwg.mxu0
        %v936 = vmax.f32 %v768, %v857
        %937 = vmax.xlane.f32.xlu0 %v936
        %v938 = vpop.xlane.xlu0 %937
        %v939 = vmax.f32 %v770, %v859
        %940 = vmax.xlane.f32.xlu0 %v939
        %v941 = vpop.xlane.xlu0 %940
        %v942 = vmax.f32 %v773, %v862
        %943 = vmax.xlane.f32.xlu0 %v942
        %v944 = vpop.xlane.xlu0 %943
        %v945 = vmax.f32 %v775, %v864
        %946 = vmax.xlane.f32.xlu0 %v945
        %v947 = vpop.xlane.xlu0 %946
        %v948 = vmax.f32 %v778, %v867
        %949 = vmax.xlane.f32.xlu0 %v948
        %v950 = vpop.xlane.xlu0 %949
        %v951 = vmax.f32 %v780, %v869
        %952 = vmax.xlane.f32.xlu0 %v951
        %v953 = vpop.xlane.xlu0 %952
        %v954 = vmax.f32 %v783, %v872
        %955 = vmax.xlane.f32.xlu0 %v954
        %v956 = vpop.xlane.xlu0 %955
        %v957 = vmax.f32 %v785, %v874
        %958 = vmax.xlane.f32.xlu0 %v957
        %v959 = vpop.xlane.xlu0 %958
        %v960 = vmax.f32 %v788, %v877
        %961 = vmax.xlane.f32.xlu0 %v960
        %v962 = vpop.xlane.xlu0 %961
        %v963 = vmax.f32 %v790, %v879
        %964 = vmax.xlane.f32.xlu0 %v963
        %v965 = vpop.xlane.xlu0 %964
        %v966 = vmax.f32 %v793, %v882
        %967 = vmax.xlane.f32.xlu0 %v966
        %v968 = vpop.xlane.xlu0 %967
        %v969 = vmax.f32 %v795, %v884
        %970 = vmax.xlane.f32.xlu0 %v969
        %v971 = vpop.xlane.xlu0 %970
        %v972 = vmax.f32 %v798, %v887
        %973 = vmax.xlane.f32.xlu0 %v972
        %v974 = vpop.xlane.xlu0 %973
        %v975 = vmax.f32 %v800, %v889
        %976 = vmax.xlane.f32.xlu0 %v975
        %v977 = vpop.xlane.xlu0 %976
        %v978 = vmax.f32 %v803, %v892
        %979 = vmax.xlane.f32.xlu0 %v978
        %v980 = vpop.xlane.xlu0 %979
        %v981 = vmax.f32 %v805, %v894
        %982 = vmax.xlane.f32.xlu0 %v981
        %v983 = vpop.xlane.xlu0 %982
        %v984 = vmax.f32 %v808, %v897
        %985 = vmax.xlane.f32.xlu0 %v984
        %v986 = vpop.xlane.xlu0 %985
        %v987 = vmax.f32 %v810, %v899
        %988 = vmax.xlane.f32.xlu0 %v987
        %v989 = vpop.xlane.xlu0 %988
        %v990 = vmax.f32 %v813, %v902
        %991 = vmax.xlane.f32.xlu0 %v990
        %v992 = vpop.xlane.xlu0 %991
        %v993 = vmax.f32 %v815, %v904
        %994 = vmax.xlane.f32.xlu0 %v993
        %v995 = vpop.xlane.xlu0 %994
        %v996 = vmax.f32 %v818, %v907
        %997 = vmax.xlane.f32.xlu0 %v996
        %v998 = vpop.xlane.xlu0 %997
        %v999 = vmax.f32 %v820, %v909
        %1000 = vmax.xlane.f32.xlu0 %v999
        %v1001 = vpop.xlane.xlu0 %1000
        %v1002 = vmax.f32 %v823, %v912
        %1003 = vmax.xlane.f32.xlu0 %v1002
        %v1004 = vpop.xlane.xlu0 %1003
        %v1005 = vmax.f32 %v825, %v914
        %1006 = vmax.xlane.f32.xlu0 %v1005
        %v1007 = vpop.xlane.xlu0 %1006
        %v1008 = vmax.f32 %v828, %v917
        %1009 = vmax.xlane.f32.xlu0 %v1008
        %v1010 = vpop.xlane.xlu0 %1009
        %v1011 = vmax.f32 %v830, %v919
        %1012 = vmax.xlane.f32.xlu0 %v1011
        %v1013 = vpop.xlane.xlu0 %1012
        %v1014 = vmax.f32 %v833, %v922
        %1015 = vmax.xlane.f32.xlu0 %v1014
        %v1016 = vpop.xlane.xlu0 %1015
        %v1017 = vmax.f32 %v835, %v924
        %1018 = vmax.xlane.f32.xlu0 %v1017
        %v1019 = vpop.xlane.xlu0 %1018
        %v1020 = vmax.f32 %v838, %v927
        %1021 = vmax.xlane.f32.xlu0 %v1020
        %v1022 = vpop.xlane.xlu0 %1021
        %v1023 = vmax.f32 %v840, %v929
        %1024 = vmax.xlane.f32.xlu0 %v1023
        %v1025 = vpop.xlane.xlu0 %1024
        %v1026 = vmax.f32 %v843, %v932
        %1027 = vmax.xlane.f32.xlu0 %v1026
        %v1028 = vpop.xlane.xlu0 %1027
        %v1029 = vmax.f32 %v845, %v934
        %1030 = vmax.xlane.f32.xlu0 %v1029
        %v1031 = vpop.xlane.xlu0 %1030
        %v1032 = vsub.f32 %v768, %v938
        %v1033 = vsub.f32 %v857, %v938
        %v1034 = vsub.f32 %v770, %v941
        %v1035 = vsub.f32 %v859, %v941
        %v1036 = vsub.f32 %v773, %v944
        %v1037 = vsub.f32 %v862, %v944
        %v1038 = vsub.f32 %v775, %v947
        %v1039 = vsub.f32 %v864, %v947
        %v1040 = vsub.f32 %v778, %v950
        %v1041 = vsub.f32 %v867, %v950
        %v1042 = vsub.f32 %v780, %v953
        %v1043 = vsub.f32 %v869, %v953
        %v1044 = vsub.f32 %v783, %v956
        %v1045 = vsub.f32 %v872, %v956
        %v1046 = vsub.f32 %v785, %v959
        %v1047 = vsub.f32 %v874, %v959
        %v1048 = vsub.f32 %v788, %v962
        %v1049 = vsub.f32 %v877, %v962
        %v1050 = vsub.f32 %v790, %v965
        %v1051 = vsub.f32 %v879, %v965
        %v1052 = vsub.f32 %v793, %v968
        %v1053 = vsub.f32 %v882, %v968
        %v1054 = vsub.f32 %v795, %v971
        %v1055 = vsub.f32 %v884, %v971
        %v1056 = vsub.f32 %v798, %v974
        %v1057 = vsub.f32 %v887, %v974
        %v1058 = vsub.f32 %v800, %v977
        %v1059 = vsub.f32 %v889, %v977
        %v1060 = vsub.f32 %v803, %v980
        %v1061 = vsub.f32 %v892, %v980
        %v1062 = vsub.f32 %v805, %v983
        %v1063 = vsub.f32 %v894, %v983
        %v1064 = vsub.f32 %v808, %v986
        %v1065 = vsub.f32 %v897, %v986
        %v1066 = vsub.f32 %v810, %v989
        %v1067 = vsub.f32 %v899, %v989
        %v1068 = vsub.f32 %v813, %v992
        %v1069 = vsub.f32 %v902, %v992
        %v1070 = vsub.f32 %v815, %v995
        %v1071 = vsub.f32 %v904, %v995
        %v1072 = vsub.f32 %v818, %v998
        %v1073 = vsub.f32 %v907, %v998
        %v1074 = vsub.f32 %v820, %v1001
        %v1075 = vsub.f32 %v909, %v1001
        %v1076 = vsub.f32 %v823, %v1004
        %v1077 = vsub.f32 %v912, %v1004
        %v1078 = vsub.f32 %v825, %v1007
        %v1079 = vsub.f32 %v914, %v1007
        %v1080 = vsub.f32 %v828, %v1010
        %v1081 = vsub.f32 %v917, %v1010
        %v1082 = vsub.f32 %v830, %v1013
        %v1083 = vsub.f32 %v919, %v1013
        %v1084 = vsub.f32 %v833, %v1016
        %v1085 = vsub.f32 %v922, %v1016
        %v1086 = vsub.f32 %v835, %v1019
        %v1087 = vsub.f32 %v924, %v1019
        %v1088 = vsub.f32 %v838, %v1022
        %v1089 = vsub.f32 %v927, %v1022
        %v1090 = vsub.f32 %v840, %v1025
        %v1091 = vsub.f32 %v929, %v1025
        %v1092 = vsub.f32 %v843, %v1028
        %v1093 = vsub.f32 %v932, %v1028
        %v1094 = vsub.f32 %v845, %v1031
        %v1095 = vsub.f32 %v934, %v1031
        %v1096 = vmul.f32 %v1032, 1.442695
        %v1097 = vpow.pop %v1096
        %v1098 = vmul.f32 %v1033, 1.442695
        %v1099 = vpow.pop %v1098
        %v1100 = vmul.f32 %v1034, 1.442695
        %v1101 = vpow.pop %v1100
        %v1102 = vmul.f32 %v1035, 1.442695
        %v1103 = vpow.pop %v1102
        %v1104 = vmul.f32 %v1036, 1.442695
        %v1105 = vpow.pop %v1104
        %v1106 = vmul.f32 %v1037, 1.442695
        %v1107 = vpow.pop %v1106
        %v1108 = vmul.f32 %v1038, 1.442695
        %v1109 = vpow.pop %v1108
        %v1110 = vmul.f32 %v1039, 1.442695
        %v1111 = vpow.pop %v1110
        %v1112 = vmul.f32 %v1040, 1.442695
        %v1113 = vpow.pop %v1112
        %v1114 = vmul.f32 %v1041, 1.442695
        %v1115 = vpow.pop %v1114
        %v1116 = vmul.f32 %v1042, 1.442695
        %v1117 = vpow.pop %v1116
        %v1118 = vmul.f32 %v1043, 1.442695
        %v1119 = vpow.pop %v1118
        %v1120 = vmul.f32 %v1044, 1.442695
        %v1121 = vpow.pop %v1120
        %v1122 = vmul.f32 %v1045, 1.442695
        %v1123 = vpow.pop %v1122
        %v1124 = vmul.f32 %v1046, 1.442695
        %v1125 = vpow.pop %v1124
        %v1126 = vmul.f32 %v1047, 1.442695
        %v1127 = vpow.pop %v1126
        %v1128 = vmul.f32 %v1048, 1.442695
        %v1129 = vpow.pop %v1128
        %v1130 = vmul.f32 %v1049, 1.442695
        %v1131 = vpow.pop %v1130
        %v1132 = vmul.f32 %v1050, 1.442695
        %v1133 = vpow.pop %v1132
        %v1134 = vmul.f32 %v1051, 1.442695
        %v1135 = vpow.pop %v1134
        %v1136 = vmul.f32 %v1052, 1.442695
        %v1137 = vpow.pop %v1136
        %v1138 = vmul.f32 %v1053, 1.442695
        %v1139 = vpow.pop %v1138
        %v1140 = vmul.f32 %v1054, 1.442695
        %v1141 = vpow.pop %v1140
        %v1142 = vmul.f32 %v1055, 1.442695
        %v1143 = vpow.pop %v1142
        %v1144 = vmul.f32 %v1056, 1.442695
        %v1145 = vpow.pop %v1144
        %v1146 = vmul.f32 %v1057, 1.442695
        %v1147 = vpow.pop %v1146
        %v1148 = vmul.f32 %v1058, 1.442695
        %v1149 = vpow.pop %v1148
        %v1150 = vmul.f32 %v1059, 1.442695
        %v1151 = vpow.pop %v1150
        %v1152 = vmul.f32 %v1060, 1.442695
        %v1153 = vpow.pop %v1152
        %v1154 = vmul.f32 %v1061, 1.442695
        %v1155 = vpow.pop %v1154
        %v1156 = vmul.f32 %v1062, 1.442695
        %v1157 = vpow.pop %v1156
        %v1158 = vmul.f32 %v1063, 1.442695
        %v1159 = vpow.pop %v1158
        %v1160 = vmul.f32 %v1064, 1.442695
        %v1161 = vpow.pop %v1160
        %v1162 = vmul.f32 %v1065, 1.442695
        %v1163 = vpow.pop %v1162
        %v1164 = vmul.f32 %v1066, 1.442695
        %v1165 = vpow.pop %v1164
        %v1166 = vmul.f32 %v1067, 1.442695
        %v1167 = vpow.pop %v1166
        %v1168 = vmul.f32 %v1068, 1.442695
        %v1169 = vpow.pop %v1168
        %v1170 = vmul.f32 %v1069, 1.442695
        %v1171 = vpow.pop %v1170
        %v1172 = vmul.f32 %v1070, 1.442695
        %v1173 = vpow.pop %v1172
        %v1174 = vmul.f32 %v1071, 1.442695
        %v1175 = vpow.pop %v1174
        %v1176 = vmul.f32 %v1072, 1.442695
        %v1177 = vpow.pop %v1176
        %v1178 = vmul.f32 %v1073, 1.442695
        %v1179 = vpow.pop %v1178
        %v1180 = vmul.f32 %v1074, 1.442695
        %v1181 = vpow.pop %v1180
        %v1182 = vmul.f32 %v1075, 1.442695
        %v1183 = vpow.pop %v1182
        %v1184 = vmul.f32 %v1076, 1.442695
        %v1185 = vpow.pop %v1184
        %v1186 = vmul.f32 %v1077, 1.442695
        %v1187 = vpow.pop %v1186
        %v1188 = vmul.f32 %v1078, 1.442695
        %v1189 = vpow.pop %v1188
        %v1190 = vmul.f32 %v1079, 1.442695
        %v1191 = vpow.pop %v1190
        %v1192 = vmul.f32 %v1080, 1.442695
        %v1193 = vpow.pop %v1192
        %v1194 = vmul.f32 %v1081, 1.442695
        %v1195 = vpow.pop %v1194
        %v1196 = vmul.f32 %v1082, 1.442695
        %v1197 = vpow.pop %v1196
        %v1198 = vmul.f32 %v1083, 1.442695
        %v1199 = vpow.pop %v1198
        %v1200 = vmul.f32 %v1084, 1.442695
        %v1201 = vpow.pop %v1200
        %v1202 = vmul.f32 %v1085, 1.442695
        %v1203 = vpow.pop %v1202
        %v1204 = vmul.f32 %v1086, 1.442695
        %v1205 = vpow.pop %v1204
        %v1206 = vmul.f32 %v1087, 1.442695
        %v1207 = vpow.pop %v1206
        %v1208 = vmul.f32 %v1088, 1.442695
        %v1209 = vpow.pop %v1208
        %v1210 = vmul.f32 %v1089, 1.442695
        %v1211 = vpow.pop %v1210
        %v1212 = vmul.f32 %v1090, 1.442695
        %v1213 = vpow.pop %v1212
        %v1214 = vmul.f32 %v1091, 1.442695
        %v1215 = vpow.pop %v1214
        %v1216 = vmul.f32 %v1092, 1.442695
        %v1217 = vpow.pop %v1216
        %v1218 = vmul.f32 %v1093, 1.442695
        %v1219 = vpow.pop %v1218
        %v1220 = vmul.f32 %v1094, 1.442695
        %v1221 = vpow.pop %v1220
        %v1222 = vmul.f32 %v1095, 1.442695
        %v1223 = vpow.pop %v1222
        %v1224 = vadd.f32 %v1097, %v1099
        %1225 = vadd.xlane.f32.xlu0 %v1224
        %v1226 = vpop.xlane.xlu0 %1225
        %v1227 = vadd.f32 %v1101, %v1103
        %1228 = vadd.xlane.f32.xlu0 %v1227
        %v1229 = vpop.xlane.xlu0 %1228
        %v1230 = vadd.f32 %v1105, %v1107
        %1231 = vadd.xlane.f32.xlu0 %v1230
        %v1232 = vpop.xlane.xlu0 %1231
        %v1233 = vadd.f32 %v1109, %v1111
        %1234 = vadd.xlane.f32.xlu0 %v1233
        %v1235 = vpop.xlane.xlu0 %1234
        %v1236 = vadd.f32 %v1113, %v1115
        %1237 = vadd.xlane.f32.xlu0 %v1236
        %v1238 = vpop.xlane.xlu0 %1237
        %v1239 = vadd.f32 %v1117, %v1119
        %1240 = vadd.xlane.f32.xlu0 %v1239
        %v1241 = vpop.xlane.xlu0 %1240
        %v1242 = vadd.f32 %v1121, %v1123
        %1243 = vadd.xlane.f32.xlu0 %v1242
        %v1244 = vpop.xlane.xlu0 %1243
        %v1245 = vadd.f32 %v1125, %v1127
        %1246 = vadd.xlane.f32.xlu0 %v1245
        %v1247 = vpop.xlane.xlu0 %1246
        %v1248 = vadd.f32 %v1129, %v1131
        %1249 = vadd.xlane.f32.xlu0 %v1248
        %v1250 = vpop.xlane.xlu0 %1249
        %v1251 = vadd.f32 %v1133, %v1135
        %1252 = vadd.xlane.f32.xlu0 %v1251
        %v1253 = vpop.xlane.xlu0 %1252
        %v1254 = vadd.f32 %v1137, %v1139
        %1255 = vadd.xlane.f32.xlu0 %v1254
        %v1256 = vpop.xlane.xlu0 %1255
        %v1257 = vadd.f32 %v1141, %v1143
        %1258 = vadd.xlane.f32.xlu0 %v1257
        %v1259 = vpop.xlane.xlu0 %1258
        %v1260 = vadd.f32 %v1145, %v1147
        %1261 = vadd.xlane.f32.xlu0 %v1260
        %v1262 = vpop.xlane.xlu0 %1261
        %v1263 = vadd.f32 %v1149, %v1151
        %1264 = vadd.xlane.f32.xlu0 %v1263
        %v1265 = vpop.xlane.xlu0 %1264
        %v1266 = vadd.f32 %v1153, %v1155
        %1267 = vadd.xlane.f32.xlu0 %v1266
        %v1268 = vpop.xlane.xlu0 %1267
        %v1269 = vadd.f32 %v1157, %v1159
        %1270 = vadd.xlane.f32.xlu0 %v1269
        %v1271 = vpop.xlane.xlu0 %1270
        %v1272 = vadd.f32 %v1161, %v1163
        %1273 = vadd.xlane.f32.xlu0 %v1272
        %v1274 = vpop.xlane.xlu0 %1273
        %v1275 = vadd.f32 %v1165, %v1167
        %1276 = vadd.xlane.f32.xlu0 %v1275
        %v1277 = vpop.xlane.xlu0 %1276
        %v1278 = vadd.f32 %v1169, %v1171
        %1279 = vadd.xlane.f32.xlu0 %v1278
        %v1280 = vpop.xlane.xlu0 %1279
        %v1281 = vadd.f32 %v1173, %v1175
        %1282 = vadd.xlane.f32.xlu0 %v1281
        %v1283 = vpop.xlane.xlu0 %1282
        %v1284 = vadd.f32 %v1177, %v1179
        %1285 = vadd.xlane.f32.xlu0 %v1284
        %v1286 = vpop.xlane.xlu0 %1285
        %v1287 = vadd.f32 %v1181, %v1183
        %1288 = vadd.xlane.f32.xlu0 %v1287
        %v1289 = vpop.xlane.xlu0 %1288
        %v1290 = vadd.f32 %v1185, %v1187
        %1291 = vadd.xlane.f32.xlu0 %v1290
        %v1292 = vpop.xlane.xlu0 %1291
        %v1293 = vadd.f32 %v1189, %v1191
        %1294 = vadd.xlane.f32.xlu0 %v1293
        %v1295 = vpop.xlane.xlu0 %1294
        %v1296 = vadd.f32 %v1193, %v1195
        %1297 = vadd.xlane.f32.xlu0 %v1296
        %v1298 = vpop.xlane.xlu0 %1297
        %v1299 = vadd.f32 %v1197, %v1199
        %1300 = vadd.xlane.f32.xlu0 %v1299
        %v1301 = vpop.xlane.xlu0 %1300
        %v1302 = vadd.f32 %v1201, %v1203
        %1303 = vadd.xlane.f32.xlu0 %v1302
        %v1304 = vpop.xlane.xlu0 %1303
        %v1305 = vadd.f32 %v1205, %v1207
        %1306 = vadd.xlane.f32.xlu0 %v1305
        %v1307 = vpop.xlane.xlu0 %1306
        %v1308 = vadd.f32 %v1209, %v1211
        %1309 = vadd.xlane.f32.xlu0 %v1308
        %v1310 = vpop.xlane.xlu0 %1309
        %v1311 = vadd.f32 %v1213, %v1215
        %1312 = vadd.xlane.f32.xlu0 %v1311
        %v1313 = vpop.xlane.xlu0 %1312
        %v1314 = vadd.f32 %v1217, %v1219
        %1315 = vadd.xlane.f32.xlu0 %v1314
        %v1316 = vpop.xlane.xlu0 %1315
        %v1317 = vadd.f32 %v1221, %v1223
        %1318 = vadd.xlane.f32.xlu0 %v1317
        %v1319 = vpop.xlane.xlu0 %1318
        %v1320 = vrcp.pop %v1226
        %v1321 = vmul.f32 %v1226, %v1320
        %v1322 = vsub.f32 1.0, %v1321
        %v1323 = vmul.f32 %v1320, %v1322
        %v1324 = vadd.f32 %v1320, %v1323
        %vm1325 = vweird.f32 %v1226
        %vm1326 = vweird.f32 %v1320
        %vm1327 = vmor %vm1325, %vm1326
        %v1328 = vsel %vm1327, %v1320, %v1324
        %v1329 = vand.u32 2147483647, %v1226
        %vm1330 = vcmp.eq.f32.partialorder %v1329, 8.507059e+37
        %v1331 = vand.u32 %v1226, 2147483648
        %v1332 = vor.u32 1.1754944e-38, %v1331
        %v1333 = vsel %vm1330, %v1332, %v1328
        %v1334 = vrcp.pop %v1229
        %v1335 = vmul.f32 %v1229, %v1334
        %v1336 = vsub.f32 1.0, %v1335
        %v1337 = vmul.f32 %v1334, %v1336
        %v1338 = vadd.f32 %v1334, %v1337
        %vm1339 = vweird.f32 %v1229
        %vm1340 = vweird.f32 %v1334
        %vm1341 = vmor %vm1339, %vm1340
        %v1342 = vsel %vm1341, %v1334, %v1338
        %v1343 = vand.u32 2147483647, %v1229
        %vm1344 = vcmp.eq.f32.partialorder %v1343, 8.507059e+37
        %v1345 = vand.u32 %v1229, 2147483648
        %v1346 = vor.u32 1.1754944e-38, %v1345
        %v1347 = vsel %vm1344, %v1346, %v1342
        %v1348 = vrcp.pop %v1232
        %v1349 = vmul.f32 %v1232, %v1348
        %v1350 = vsub.f32 1.0, %v1349
        %v1351 = vmul.f32 %v1348, %v1350
        %v1352 = vadd.f32 %v1348, %v1351
        %vm1353 = vweird.f32 %v1232
        %vm1354 = vweird.f32 %v1348
        %vm1355 = vmor %vm1353, %vm1354
        %v1356 = vsel %vm1355, %v1348, %v1352
        %v1357 = vand.u32 2147483647, %v1232
        %vm1358 = vcmp.eq.f32.partialorder %v1357, 8.507059e+37
        %v1359 = vand.u32 %v1232, 2147483648
        %v1360 = vor.u32 1.1754944e-38, %v1359
        %v1361 = vsel %vm1358, %v1360, %v1356
        %v1362 = vrcp.pop %v1235
        %v1363 = vmul.f32 %v1235, %v1362
        %v1364 = vsub.f32 1.0, %v1363
        %v1365 = vmul.f32 %v1362, %v1364
        %v1366 = vadd.f32 %v1362, %v1365
        %vm1367 = vweird.f32 %v1235
        %vm1368 = vweird.f32 %v1362
        %vm1369 = vmor %vm1367, %vm1368
        %v1370 = vsel %vm1369, %v1362, %v1366
        %v1371 = vand.u32 2147483647, %v1235
        %vm1372 = vcmp.eq.f32.partialorder %v1371, 8.507059e+37
        %v1373 = vand.u32 %v1235, 2147483648
        %v1374 = vor.u32 1.1754944e-38, %v1373
        %v1375 = vsel %vm1372, %v1374, %v1370
        %v1376 = vrcp.pop %v1238
        %v1377 = vmul.f32 %v1238, %v1376
        %v1378 = vsub.f32 1.0, %v1377
        %v1379 = vmul.f32 %v1376, %v1378
        %v1380 = vadd.f32 %v1376, %v1379
        %vm1381 = vweird.f32 %v1238
        %vm1382 = vweird.f32 %v1376
        %vm1383 = vmor %vm1381, %vm1382
        %v1384 = vsel %vm1383, %v1376, %v1380
        %v1385 = vand.u32 2147483647, %v1238
        %vm1386 = vcmp.eq.f32.partialorder %v1385, 8.507059e+37
        %v1387 = vand.u32 %v1238, 2147483648
        %v1388 = vor.u32 1.1754944e-38, %v1387
        %v1389 = vsel %vm1386, %v1388, %v1384
        %v1390 = vrcp.pop %v1241
        %v1391 = vmul.f32 %v1241, %v1390
        %v1392 = vsub.f32 1.0, %v1391
        %v1393 = vmul.f32 %v1390, %v1392
        %v1394 = vadd.f32 %v1390, %v1393
        %vm1395 = vweird.f32 %v1241
        %vm1396 = vweird.f32 %v1390
        %vm1397 = vmor %vm1395, %vm1396
        %v1398 = vsel %vm1397, %v1390, %v1394
        %v1399 = vand.u32 2147483647, %v1241
        %vm1400 = vcmp.eq.f32.partialorder %v1399, 8.507059e+37
        %v1401 = vand.u32 %v1241, 2147483648
        %v1402 = vor.u32 1.1754944e-38, %v1401
        %v1403 = vsel %vm1400, %v1402, %v1398
        %v1404 = vrcp.pop %v1244
        %v1405 = vmul.f32 %v1244, %v1404
        %v1406 = vsub.f32 1.0, %v1405
        %v1407 = vmul.f32 %v1404, %v1406
        %v1408 = vadd.f32 %v1404, %v1407
        %vm1409 = vweird.f32 %v1244
        %vm1410 = vweird.f32 %v1404
        %vm1411 = vmor %vm1409, %vm1410
        %v1412 = vsel %vm1411, %v1404, %v1408
        %v1413 = vand.u32 2147483647, %v1244
        %vm1414 = vcmp.eq.f32.partialorder %v1413, 8.507059e+37
        %v1415 = vand.u32 %v1244, 2147483648
        %v1416 = vor.u32 1.1754944e-38, %v1415
        %v1417 = vsel %vm1414, %v1416, %v1412
        %v1418 = vrcp.pop %v1247
        %v1419 = vmul.f32 %v1247, %v1418
        %v1420 = vsub.f32 1.0, %v1419
        %v1421 = vmul.f32 %v1418, %v1420
        %v1422 = vadd.f32 %v1418, %v1421
        %vm1423 = vweird.f32 %v1247
        %vm1424 = vweird.f32 %v1418
        %vm1425 = vmor %vm1423, %vm1424
        %v1426 = vsel %vm1425, %v1418, %v1422
        %v1427 = vand.u32 2147483647, %v1247
        %vm1428 = vcmp.eq.f32.partialorder %v1427, 8.507059e+37
        %v1429 = vand.u32 %v1247, 2147483648
        %v1430 = vor.u32 1.1754944e-38, %v1429
        %v1431 = vsel %vm1428, %v1430, %v1426
        %v1432 = vrcp.pop %v1250
        %v1433 = vmul.f32 %v1250, %v1432
        %v1434 = vsub.f32 1.0, %v1433
        %v1435 = vmul.f32 %v1432, %v1434
        %v1436 = vadd.f32 %v1432, %v1435
        %vm1437 = vweird.f32 %v1250
        %vm1438 = vweird.f32 %v1432
        %vm1439 = vmor %vm1437, %vm1438
        %v1440 = vsel %vm1439, %v1432, %v1436
        %v1441 = vand.u32 2147483647, %v1250
        %vm1442 = vcmp.eq.f32.partialorder %v1441, 8.507059e+37
        %v1443 = vand.u32 %v1250, 2147483648
        %v1444 = vor.u32 1.1754944e-38, %v1443
        %v1445 = vsel %vm1442, %v1444, %v1440
        %v1446 = vrcp.pop %v1253
        %v1447 = vmul.f32 %v1253, %v1446
        %v1448 = vsub.f32 1.0, %v1447
        %v1449 = vmul.f32 %v1446, %v1448
        %v1450 = vadd.f32 %v1446, %v1449
        %vm1451 = vweird.f32 %v1253
        %vm1452 = vweird.f32 %v1446
        %vm1453 = vmor %vm1451, %vm1452
        %v1454 = vsel %vm1453, %v1446, %v1450
        %v1455 = vand.u32 2147483647, %v1253
        %vm1456 = vcmp.eq.f32.partialorder %v1455, 8.507059e+37
        %v1457 = vand.u32 %v1253, 2147483648
        %v1458 = vor.u32 1.1754944e-38, %v1457
        %v1459 = vsel %vm1456, %v1458, %v1454
        %v1460 = vrcp.pop %v1256
        %v1461 = vmul.f32 %v1256, %v1460
        %v1462 = vsub.f32 1.0, %v1461
        %v1463 = vmul.f32 %v1460, %v1462
        %v1464 = vadd.f32 %v1460, %v1463
        %vm1465 = vweird.f32 %v1256
        %vm1466 = vweird.f32 %v1460
        %vm1467 = vmor %vm1465, %vm1466
        %v1468 = vsel %vm1467, %v1460, %v1464
        %v1469 = vand.u32 2147483647, %v1256
        %vm1470 = vcmp.eq.f32.partialorder %v1469, 8.507059e+37
        %v1471 = vand.u32 %v1256, 2147483648
        %v1472 = vor.u32 1.1754944e-38, %v1471
        %v1473 = vsel %vm1470, %v1472, %v1468
        %v1474 = vrcp.pop %v1259
        %v1475 = vmul.f32 %v1259, %v1474
        %v1476 = vsub.f32 1.0, %v1475
        %v1477 = vmul.f32 %v1474, %v1476
        %v1478 = vadd.f32 %v1474, %v1477
        %vm1479 = vweird.f32 %v1259
        %vm1480 = vweird.f32 %v1474
        %vm1481 = vmor %vm1479, %vm1480
        %v1482 = vsel %vm1481, %v1474, %v1478
        %v1483 = vand.u32 2147483647, %v1259
        %vm1484 = vcmp.eq.f32.partialorder %v1483, 8.507059e+37
        %v1485 = vand.u32 %v1259, 2147483648
        %v1486 = vor.u32 1.1754944e-38, %v1485
        %v1487 = vsel %vm1484, %v1486, %v1482
        %v1488 = vrcp.pop %v1262
        %v1489 = vmul.f32 %v1262, %v1488
        %v1490 = vsub.f32 1.0, %v1489
        %v1491 = vmul.f32 %v1488, %v1490
        %v1492 = vadd.f32 %v1488, %v1491
        %vm1493 = vweird.f32 %v1262
        %vm1494 = vweird.f32 %v1488
        %vm1495 = vmor %vm1493, %vm1494
        %v1496 = vsel %vm1495, %v1488, %v1492
        %v1497 = vand.u32 2147483647, %v1262
        %vm1498 = vcmp.eq.f32.partialorder %v1497, 8.507059e+37
        %v1499 = vand.u32 %v1262, 2147483648
        %v1500 = vor.u32 1.1754944e-38, %v1499
        %v1501 = vsel %vm1498, %v1500, %v1496
        %v1502 = vrcp.pop %v1265
        %v1503 = vmul.f32 %v1265, %v1502
        %v1504 = vsub.f32 1.0, %v1503
        %v1505 = vmul.f32 %v1502, %v1504
        %v1506 = vadd.f32 %v1502, %v1505
        %vm1507 = vweird.f32 %v1265
        %vm1508 = vweird.f32 %v1502
        %vm1509 = vmor %vm1507, %vm1508
        %v1510 = vsel %vm1509, %v1502, %v1506
        %v1511 = vand.u32 2147483647, %v1265
        %vm1512 = vcmp.eq.f32.partialorder %v1511, 8.507059e+37
        %v1513 = vand.u32 %v1265, 2147483648
        %v1514 = vor.u32 1.1754944e-38, %v1513
        %v1515 = vsel %vm1512, %v1514, %v1510
        %v1516 = vrcp.pop %v1268
        %v1517 = vmul.f32 %v1268, %v1516
        %v1518 = vsub.f32 1.0, %v1517
        %v1519 = vmul.f32 %v1516, %v1518
        %v1520 = vadd.f32 %v1516, %v1519
        %vm1521 = vweird.f32 %v1268
        %vm1522 = vweird.f32 %v1516
        %vm1523 = vmor %vm1521, %vm1522
        %v1524 = vsel %vm1523, %v1516, %v1520
        %v1525 = vand.u32 2147483647, %v1268
        %vm1526 = vcmp.eq.f32.partialorder %v1525, 8.507059e+37
        %v1527 = vand.u32 %v1268, 2147483648
        %v1528 = vor.u32 1.1754944e-38, %v1527
        %v1529 = vsel %vm1526, %v1528, %v1524
        %v1530 = vrcp.pop %v1271
        %v1531 = vmul.f32 %v1271, %v1530
        %v1532 = vsub.f32 1.0, %v1531
        %v1533 = vmul.f32 %v1530, %v1532
        %v1534 = vadd.f32 %v1530, %v1533
        %vm1535 = vweird.f32 %v1271
        %vm1536 = vweird.f32 %v1530
        %vm1537 = vmor %vm1535, %vm1536
        %v1538 = vsel %vm1537, %v1530, %v1534
        %v1539 = vand.u32 2147483647, %v1271
        %vm1540 = vcmp.eq.f32.partialorder %v1539, 8.507059e+37
        %v1541 = vand.u32 %v1271, 2147483648
        %v1542 = vor.u32 1.1754944e-38, %v1541
        %v1543 = vsel %vm1540, %v1542, %v1538
        %v1544 = vrcp.pop %v1274
        %v1545 = vmul.f32 %v1274, %v1544
        %v1546 = vsub.f32 1.0, %v1545
        %v1547 = vmul.f32 %v1544, %v1546
        %v1548 = vadd.f32 %v1544, %v1547
        %vm1549 = vweird.f32 %v1274
        %vm1550 = vweird.f32 %v1544
        %vm1551 = vmor %vm1549, %vm1550
        %v1552 = vsel %vm1551, %v1544, %v1548
        %v1553 = vand.u32 2147483647, %v1274
        %vm1554 = vcmp.eq.f32.partialorder %v1553, 8.507059e+37
        %v1555 = vand.u32 %v1274, 2147483648
        %v1556 = vor.u32 1.1754944e-38, %v1555
        %v1557 = vsel %vm1554, %v1556, %v1552
        %v1558 = vrcp.pop %v1277
        %v1559 = vmul.f32 %v1277, %v1558
        %v1560 = vsub.f32 1.0, %v1559
        %v1561 = vmul.f32 %v1558, %v1560
        %v1562 = vadd.f32 %v1558, %v1561
        %vm1563 = vweird.f32 %v1277
        %vm1564 = vweird.f32 %v1558
        %vm1565 = vmor %vm1563, %vm1564
        %v1566 = vsel %vm1565, %v1558, %v1562
        %v1567 = vand.u32 2147483647, %v1277
        %vm1568 = vcmp.eq.f32.partialorder %v1567, 8.507059e+37
        %v1569 = vand.u32 %v1277, 2147483648
        %v1570 = vor.u32 1.1754944e-38, %v1569
        %v1571 = vsel %vm1568, %v1570, %v1566
        %v1572 = vrcp.pop %v1280
        %v1573 = vmul.f32 %v1280, %v1572
        %v1574 = vsub.f32 1.0, %v1573
        %v1575 = vmul.f32 %v1572, %v1574
        %v1576 = vadd.f32 %v1572, %v1575
        %vm1577 = vweird.f32 %v1280
        %vm1578 = vweird.f32 %v1572
        %vm1579 = vmor %vm1577, %vm1578
        %v1580 = vsel %vm1579, %v1572, %v1576
        %v1581 = vand.u32 2147483647, %v1280
        %vm1582 = vcmp.eq.f32.partialorder %v1581, 8.507059e+37
        %v1583 = vand.u32 %v1280, 2147483648
        %v1584 = vor.u32 1.1754944e-38, %v1583
        %v1585 = vsel %vm1582, %v1584, %v1580
        %v1586 = vrcp.pop %v1283
        %v1587 = vmul.f32 %v1283, %v1586
        %v1588 = vsub.f32 1.0, %v1587
        %v1589 = vmul.f32 %v1586, %v1588
        %v1590 = vadd.f32 %v1586, %v1589
        %vm1591 = vweird.f32 %v1283
        %vm1592 = vweird.f32 %v1586
        %vm1593 = vmor %vm1591, %vm1592
        %v1594 = vsel %vm1593, %v1586, %v1590
        %v1595 = vand.u32 2147483647, %v1283
        %vm1596 = vcmp.eq.f32.partialorder %v1595, 8.507059e+37
        %v1597 = vand.u32 %v1283, 2147483648
        %v1598 = vor.u32 1.1754944e-38, %v1597
        %v1599 = vsel %vm1596, %v1598, %v1594
        %v1600 = vrcp.pop %v1286
        %v1601 = vmul.f32 %v1286, %v1600
        %v1602 = vsub.f32 1.0, %v1601
        %v1603 = vmul.f32 %v1600, %v1602
        %v1604 = vadd.f32 %v1600, %v1603
        %vm1605 = vweird.f32 %v1286
        %vm1606 = vweird.f32 %v1600
        %vm1607 = vmor %vm1605, %vm1606
        %v1608 = vsel %vm1607, %v1600, %v1604
        %v1609 = vand.u32 2147483647, %v1286
        %vm1610 = vcmp.eq.f32.partialorder %v1609, 8.507059e+37
        %v1611 = vand.u32 %v1286, 2147483648
        %v1612 = vor.u32 1.1754944e-38, %v1611
        %v1613 = vsel %vm1610, %v1612, %v1608
        %v1614 = vrcp.pop %v1289
        %v1615 = vmul.f32 %v1289, %v1614
        %v1616 = vsub.f32 1.0, %v1615
        %v1617 = vmul.f32 %v1614, %v1616
        %v1618 = vadd.f32 %v1614, %v1617
        %vm1619 = vweird.f32 %v1289
        %vm1620 = vweird.f32 %v1614
        %vm1621 = vmor %vm1619, %vm1620
        %v1622 = vsel %vm1621, %v1614, %v1618
        %v1623 = vand.u32 2147483647, %v1289
        %vm1624 = vcmp.eq.f32.partialorder %v1623, 8.507059e+37
        %v1625 = vand.u32 %v1289, 2147483648
        %v1626 = vor.u32 1.1754944e-38, %v1625
        %v1627 = vsel %vm1624, %v1626, %v1622
        %v1628 = vrcp.pop %v1292
        %v1629 = vmul.f32 %v1292, %v1628
        %v1630 = vsub.f32 1.0, %v1629
        %v1631 = vmul.f32 %v1628, %v1630
        %v1632 = vadd.f32 %v1628, %v1631
        %vm1633 = vweird.f32 %v1292
        %vm1634 = vweird.f32 %v1628
        %vm1635 = vmor %vm1633, %vm1634
        %v1636 = vsel %vm1635, %v1628, %v1632
        %v1637 = vand.u32 2147483647, %v1292
        %vm1638 = vcmp.eq.f32.partialorder %v1637, 8.507059e+37
        %v1639 = vand.u32 %v1292, 2147483648
        %v1640 = vor.u32 1.1754944e-38, %v1639
        %v1641 = vsel %vm1638, %v1640, %v1636
        %v1642 = vrcp.pop %v1295
        %v1643 = vmul.f32 %v1295, %v1642
        %v1644 = vsub.f32 1.0, %v1643
        %v1645 = vmul.f32 %v1642, %v1644
        %v1646 = vadd.f32 %v1642, %v1645
        %vm1647 = vweird.f32 %v1295
        %vm1648 = vweird.f32 %v1642
        %vm1649 = vmor %vm1647, %vm1648
        %v1650 = vsel %vm1649, %v1642, %v1646
        %v1651 = vand.u32 2147483647, %v1295
        %vm1652 = vcmp.eq.f32.partialorder %v1651, 8.507059e+37
        %v1653 = vand.u32 %v1295, 2147483648
        %v1654 = vor.u32 1.1754944e-38, %v1653
        %v1655 = vsel %vm1652, %v1654, %v1650
        %v1656 = vrcp.pop %v1298
        %v1657 = vmul.f32 %v1298, %v1656
        %v1658 = vsub.f32 1.0, %v1657
        %v1659 = vmul.f32 %v1656, %v1658
        %v1660 = vadd.f32 %v1656, %v1659
        %vm1661 = vweird.f32 %v1298
        %vm1662 = vweird.f32 %v1656
        %vm1663 = vmor %vm1661, %vm1662
        %v1664 = vsel %vm1663, %v1656, %v1660
        %v1665 = vand.u32 2147483647, %v1298
        %vm1666 = vcmp.eq.f32.partialorder %v1665, 8.507059e+37
        %v1667 = vand.u32 %v1298, 2147483648
        %v1668 = vor.u32 1.1754944e-38, %v1667
        %v1669 = vsel %vm1666, %v1668, %v1664
        %v1670 = vrcp.pop %v1301
        %v1671 = vmul.f32 %v1301, %v1670
        %v1672 = vsub.f32 1.0, %v1671
        %v1673 = vmul.f32 %v1670, %v1672
        %v1674 = vadd.f32 %v1670, %v1673
        %vm1675 = vweird.f32 %v1301
        %vm1676 = vweird.f32 %v1670
        %vm1677 = vmor %vm1675, %vm1676
        %v1678 = vsel %vm1677, %v1670, %v1674
        %v1679 = vand.u32 2147483647, %v1301
        %vm1680 = vcmp.eq.f32.partialorder %v1679, 8.507059e+37
        %v1681 = vand.u32 %v1301, 2147483648
        %v1682 = vor.u32 1.1754944e-38, %v1681
        %v1683 = vsel %vm1680, %v1682, %v1678
        %v1684 = vrcp.pop %v1304
        %v1685 = vmul.f32 %v1304, %v1684
        %v1686 = vsub.f32 1.0, %v1685
        %v1687 = vmul.f32 %v1684, %v1686
        %v1688 = vadd.f32 %v1684, %v1687
        %vm1689 = vweird.f32 %v1304
        %vm1690 = vweird.f32 %v1684
        %vm1691 = vmor %vm1689, %vm1690
        %v1692 = vsel %vm1691, %v1684, %v1688
        %v1693 = vand.u32 2147483647, %v1304
        %vm1694 = vcmp.eq.f32.partialorder %v1693, 8.507059e+37
        %v1695 = vand.u32 %v1304, 2147483648
        %v1696 = vor.u32 1.1754944e-38, %v1695
        %v1697 = vsel %vm1694, %v1696, %v1692
        %v1698 = vrcp.pop %v1307
        %v1699 = vmul.f32 %v1307, %v1698
        %v1700 = vsub.f32 1.0, %v1699
        %v1701 = vmul.f32 %v1698, %v1700
        %v1702 = vadd.f32 %v1698, %v1701
        %vm1703 = vweird.f32 %v1307
        %vm1704 = vweird.f32 %v1698
        %vm1705 = vmor %vm1703, %vm1704
        %v1706 = vsel %vm1705, %v1698, %v1702
        %v1707 = vand.u32 2147483647, %v1307
        %vm1708 = vcmp.eq.f32.partialorder %v1707, 8.507059e+37
        %v1709 = vand.u32 %v1307, 2147483648
        %v1710 = vor.u32 1.1754944e-38, %v1709
        %v1711 = vsel %vm1708, %v1710, %v1706
        %v1712 = vrcp.pop %v1310
        %v1713 = vmul.f32 %v1310, %v1712
        %v1714 = vsub.f32 1.0, %v1713
        %v1715 = vmul.f32 %v1712, %v1714
        %v1716 = vadd.f32 %v1712, %v1715
        %vm1717 = vweird.f32 %v1310
        %vm1718 = vweird.f32 %v1712
        %vm1719 = vmor %vm1717, %vm1718
        %v1720 = vsel %vm1719, %v1712, %v1716
        %v1721 = vand.u32 2147483647, %v1310
        %vm1722 = vcmp.eq.f32.partialorder %v1721, 8.507059e+37
        %v1723 = vand.u32 %v1310, 2147483648
        %v1724 = vor.u32 1.1754944e-38, %v1723
        %v1725 = vsel %vm1722, %v1724, %v1720
        %v1726 = vrcp.pop %v1313
        %v1727 = vmul.f32 %v1313, %v1726
        %v1728 = vsub.f32 1.0, %v1727
        %v1729 = vmul.f32 %v1726, %v1728
        %v1730 = vadd.f32 %v1726, %v1729
        %vm1731 = vweird.f32 %v1313
        %vm1732 = vweird.f32 %v1726
        %vm1733 = vmor %vm1731, %vm1732
        %v1734 = vsel %vm1733, %v1726, %v1730
        %v1735 = vand.u32 2147483647, %v1313
        %vm1736 = vcmp.eq.f32.partialorder %v1735, 8.507059e+37
        %v1737 = vand.u32 %v1313, 2147483648
        %v1738 = vor.u32 1.1754944e-38, %v1737
        %v1739 = vsel %vm1736, %v1738, %v1734
        %v1740 = vrcp.pop %v1316
        %v1741 = vmul.f32 %v1316, %v1740
        %v1742 = vsub.f32 1.0, %v1741
        %v1743 = vmul.f32 %v1740, %v1742
        %v1744 = vadd.f32 %v1740, %v1743
        %vm1745 = vweird.f32 %v1316
        %vm1746 = vweird.f32 %v1740
        %vm1747 = vmor %vm1745, %vm1746
        %v1748 = vsel %vm1747, %v1740, %v1744
        %v1749 = vand.u32 2147483647, %v1316
        %vm1750 = vcmp.eq.f32.partialorder %v1749, 8.507059e+37
        %v1751 = vand.u32 %v1316, 2147483648
        %v1752 = vor.u32 1.1754944e-38, %v1751
        %v1753 = vsel %vm1750, %v1752, %v1748
        %v1754 = vrcp.pop %v1319
        %v1755 = vmul.f32 %v1319, %v1754
        %v1756 = vsub.f32 1.0, %v1755
        %v1757 = vmul.f32 %v1754, %v1756
        %v1758 = vadd.f32 %v1754, %v1757
        %vm1759 = vweird.f32 %v1319
        %vm1760 = vweird.f32 %v1754
        %vm1761 = vmor %vm1759, %vm1760
        %v1762 = vsel %vm1761, %v1754, %v1758
        %v1763 = vand.u32 2147483647, %v1319
        %vm1764 = vcmp.eq.f32.partialorder %v1763, 8.507059e+37
        %v1765 = vand.u32 %v1319, 2147483648
        %v1766 = vor.u32 1.1754944e-38, %v1765
        %v1767 = vsel %vm1764, %v1766, %v1762
        %v1768 = vmul.f32 %v1097, %v1333
        %v1769 = vmul.f32 %v1099, %v1333
        %v1770 = vmul.f32 %v1101, %v1347
        %v1771 = vmul.f32 %v1103, %v1347
        %v1772 = vmul.f32 %v1105, %v1361
        %v1773 = vmul.f32 %v1107, %v1361
        %v1774 = vmul.f32 %v1109, %v1375
        %v1775 = vmul.f32 %v1111, %v1375
        %v1776 = vmul.f32 %v1113, %v1389
        %v1777 = vmul.f32 %v1115, %v1389
        %v1778 = vmul.f32 %v1117, %v1403
        %v1779 = vmul.f32 %v1119, %v1403
        %v1780 = vmul.f32 %v1121, %v1417
        %v1781 = vmul.f32 %v1123, %v1417
        %v1782 = vmul.f32 %v1125, %v1431
        %v1783 = vmul.f32 %v1127, %v1431
        %v1784 = vmul.f32 %v1129, %v1445
        %v1785 = vmul.f32 %v1131, %v1445
        %v1786 = vmul.f32 %v1133, %v1459
        %v1787 = vmul.f32 %v1135, %v1459
        %v1788 = vmul.f32 %v1137, %v1473
        %v1789 = vmul.f32 %v1139, %v1473
        %v1790 = vmul.f32 %v1141, %v1487
        %v1791 = vmul.f32 %v1143, %v1487
        %v1792 = vmul.f32 %v1145, %v1501
        %v1793 = vmul.f32 %v1147, %v1501
        %v1794 = vmul.f32 %v1149, %v1515
        %v1795 = vmul.f32 %v1151, %v1515
        %v1796 = vmul.f32 %v1153, %v1529
        %v1797 = vmul.f32 %v1155, %v1529
        %v1798 = vmul.f32 %v1157, %v1543
        %v1799 = vmul.f32 %v1159, %v1543
        %v1800 = vmul.f32 %v1161, %v1557
        %v1801 = vmul.f32 %v1163, %v1557
        %v1802 = vmul.f32 %v1165, %v1571
        %v1803 = vmul.f32 %v1167, %v1571
        %v1804 = vmul.f32 %v1169, %v1585
        %v1805 = vmul.f32 %v1171, %v1585
        %v1806 = vmul.f32 %v1173, %v1599
        %v1807 = vmul.f32 %v1175, %v1599
        %v1808 = vmul.f32 %v1177, %v1613
        %v1809 = vmul.f32 %v1179, %v1613
        %v1810 = vmul.f32 %v1181, %v1627
        %v1811 = vmul.f32 %v1183, %v1627
        %v1812 = vmul.f32 %v1185, %v1641
        %v1813 = vmul.f32 %v1187, %v1641
        %v1814 = vmul.f32 %v1189, %v1655
        %v1815 = vmul.f32 %v1191, %v1655
        %v1816 = vmul.f32 %v1193, %v1669
        %v1817 = vmul.f32 %v1195, %v1669
        %v1818 = vmul.f32 %v1197, %v1683
        %v1819 = vmul.f32 %v1199, %v1683
        %v1820 = vmul.f32 %v1201, %v1697
        %v1821 = vmul.f32 %v1203, %v1697
        %v1822 = vmul.f32 %v1205, %v1711
        %v1823 = vmul.f32 %v1207, %v1711
        %v1824 = vmul.f32 %v1209, %v1725
        %v1825 = vmul.f32 %v1211, %v1725
        %v1826 = vmul.f32 %v1213, %v1739
        %v1827 = vmul.f32 %v1215, %v1739
        %v1828 = vmul.f32 %v1217, %v1753
        %v1829 = vmul.f32 %v1219, %v1753
        %v1830 = vmul.f32 %v1221, %v1767
        %v1831 = vmul.f32 %v1223, %v1767
        %1832 = vst [vmem:[%s344] sm:$0xff] %v1768
        %1833 = vst [vmem:[%s344 + $0x8] sm:$0xff] %v1769
        %1834 = vst [vmem:[%s344 + $0x10] sm:$0xff] %v1770
        %1835 = vst [vmem:[%s344 + $0x18] sm:$0xff] %v1771
        %1836 = vst [vmem:[%s344 + $0x20] sm:$0xff] %v1772
        %1837 = vst [vmem:[%s344 + $0x28] sm:$0xff] %v1773
        %1838 = vst [vmem:[%s344 + $0x30] sm:$0xff] %v1774
        %1839 = vst [vmem:[%s344 + $0x38] sm:$0xff] %v1775
        %1840 = vst [vmem:[%s344 + $0x40] sm:$0xff] %v1776
        %1841 = vst [vmem:[%s344 + $0x48] sm:$0xff] %v1777
        %1842 = vst [vmem:[%s344 + $0x50] sm:$0xff] %v1778
        %1843 = vst [vmem:[%s344 + $0x58] sm:$0xff] %v1779
        %1844 = vst [vmem:[%s344 + $0x60] sm:$0xff] %v1780
        %1845 = vst [vmem:[%s344 + $0x68] sm:$0xff] %v1781
        %1846 = vst [vmem:[%s344 + $0x70] sm:$0xff] %v1782
        %1847 = vst [vmem:[%s344 + $0x78] sm:$0xff] %v1783
        %1848 = vst [vmem:[%s344 + $0x80] sm:$0xff] %v1784
        %1849 = vst [vmem:[%s344 + $0x88] sm:$0xff] %v1785
        %1850 = vst [vmem:[%s344 + $0x90] sm:$0xff] %v1786
        %1851 = vst [vmem:[%s344 + $0x98] sm:$0xff] %v1787
        %1852 = vst [vmem:[%s344 + $0xa0] sm:$0xff] %v1788
        %1853 = vst [vmem:[%s344 + $0xa8] sm:$0xff] %v1789
        %1854 = vst [vmem:[%s344 + $0xb0] sm:$0xff] %v1790
        %1855 = vst [vmem:[%s344 + $0xb8] sm:$0xff] %v1791
        %1856 = vst [vmem:[%s344 + $0xc0] sm:$0xff] %v1792
        %1857 = vst [vmem:[%s344 + $0xc8] sm:$0xff] %v1793
        %1858 = vst [vmem:[%s344 + $0xd0] sm:$0xff] %v1794
        %1859 = vst [vmem:[%s344 + $0xd8] sm:$0xff] %v1795
        %1860 = vst [vmem:[%s344 + $0xe0] sm:$0xff] %v1796
        %1861 = vst [vmem:[%s344 + $0xe8] sm:$0xff] %v1797
        %1862 = vst [vmem:[%s344 + $0xf0] sm:$0xff] %v1798
        %1863 = vst [vmem:[%s344 + $0xf8] sm:$0xff] %v1799
        %1864 = vst [vmem:[%s344 + $0x100] sm:$0xff] %v1800
        %1865 = vst [vmem:[%s344 + $0x108] sm:$0xff] %v1801
        %1866 = vst [vmem:[%s344 + $0x110] sm:$0xff] %v1802
        %1867 = vst [vmem:[%s344 + $0x118] sm:$0xff] %v1803
        %1868 = vst [vmem:[%s344 + $0x120] sm:$0xff] %v1804
        %1869 = vst [vmem:[%s344 + $0x128] sm:$0xff] %v1805
        %1870 = vst [vmem:[%s344 + $0x130] sm:$0xff] %v1806
        %1871 = vst [vmem:[%s344 + $0x138] sm:$0xff] %v1807
        %1872 = vst [vmem:[%s344 + $0x140] sm:$0xff] %v1808
        %1873 = vst [vmem:[%s344 + $0x148] sm:$0xff] %v1809
        %1874 = vst [vmem:[%s344 + $0x150] sm:$0xff] %v1810
        %1875 = vst [vmem:[%s344 + $0x158] sm:$0xff] %v1811
        %1876 = vst [vmem:[%s344 + $0x160] sm:$0xff] %v1812
        %1877 = vst [vmem:[%s344 + $0x168] sm:$0xff] %v1813
        %1878 = vst [vmem:[%s344 + $0x170] sm:$0xff] %v1814
        %1879 = vst [vmem:[%s344 + $0x178] sm:$0xff] %v1815
        %1880 = vst [vmem:[%s344 + $0x180] sm:$0xff] %v1816
        %1881 = vst [vmem:[%s344 + $0x188] sm:$0xff] %v1817
        %1882 = vst [vmem:[%s344 + $0x190] sm:$0xff] %v1818
        %1883 = vst [vmem:[%s344 + $0x198] sm:$0xff] %v1819
        %1884 = vst [vmem:[%s344 + $0x1a0] sm:$0xff] %v1820
        %1885 = vst [vmem:[%s344 + $0x1a8] sm:$0xff] %v1821
        %1886 = vst [vmem:[%s344 + $0x1b0] sm:$0xff] %v1822
        %1887 = vst [vmem:[%s344 + $0x1b8] sm:$0xff] %v1823
        %1888 = vst [vmem:[%s344 + $0x1c0] sm:$0xff] %v1824
        %1889 = vst [vmem:[%s344 + $0x1c8] sm:$0xff] %v1825
        %1890 = vst [vmem:[%s344 + $0x1d0] sm:$0xff] %v1826
        %1891 = vst [vmem:[%s344 + $0x1d8] sm:$0xff] %v1827
        %1892 = vst [vmem:[%s344 + $0x1e0] sm:$0xff] %v1828
        %1893 = vst [vmem:[%s344 + $0x1e8] sm:$0xff] %v1829
        %1894 = vst [vmem:[%s344 + $0x1f0] sm:$0xff] %v1830
        %1895 = vst [vmem:[%s344 + $0x1f8] sm:$0xff] %v1831
        %v1896 = vpack.c.bf16 %v1770, %v1768
        %v1897 = vpack.c.bf16 %v1771, %v1769
        %v1898 = vpack.c.bf16 %v1774, %v1772
        %v1899 = vpack.c.bf16 %v1775, %v1773
        %v1900 = vpack.c.bf16 %v1778, %v1776
        %v1901 = vpack.c.bf16 %v1779, %v1777
        %v1902 = vpack.c.bf16 %v1782, %v1780
        %v1903 = vpack.c.bf16 %v1783, %v1781
        %v1904 = vpack.c.bf16 %v1786, %v1784
        %v1905 = vpack.c.bf16 %v1787, %v1785
        %v1906 = vpack.c.bf16 %v1790, %v1788
        %v1907 = vpack.c.bf16 %v1791, %v1789
        %v1908 = vpack.c.bf16 %v1794, %v1792
        %v1909 = vpack.c.bf16 %v1795, %v1793
        %v1910 = vpack.c.bf16 %v1798, %v1796
        %v1911 = vpack.c.bf16 %v1799, %v1797
        %v1912 = vpack.c.bf16 %v1802, %v1800
        %v1913 = vpack.c.bf16 %v1803, %v1801
        %v1914 = vpack.c.bf16 %v1806, %v1804
        %v1915 = vpack.c.bf16 %v1807, %v1805
        %v1916 = vpack.c.bf16 %v1810, %v1808
        %v1917 = vpack.c.bf16 %v1811, %v1809
        %v1918 = vpack.c.bf16 %v1814, %v1812
        %v1919 = vpack.c.bf16 %v1815, %v1813
        %v1920 = vpack.c.bf16 %v1818, %v1816
        %v1921 = vpack.c.bf16 %v1819, %v1817
        %v1922 = vpack.c.bf16 %v1822, %v1820
        %v1923 = vpack.c.bf16 %v1823, %v1821
        %v1924 = vpack.c.bf16 %v1826, %v1824
        %v1925 = vpack.c.bf16 %v1827, %v1825
        %v1926 = vpack.c.bf16 %v1830, %v1828
        %v1927 = vpack.c.bf16 %v1831, %v1829
        %v1960 = vunpack.c.l.b16 %v460
        %v1961 = vunpack.c.l.b16 %v461
        %v1962 = vunpack.c.l.b16 %v462
        %v1963 = vunpack.c.l.b16 %v463
        %v1964 = vunpack.c.l.b16 %v464
        %v1965 = vunpack.c.l.b16 %v465
        %v1966 = vunpack.c.l.b16 %v466
        %v1967 = vunpack.c.l.b16 %v467
        %v1968 = vunpack.c.l.b16 %v468
        %v1969 = vunpack.c.l.b16 %v469
        %v1970 = vunpack.c.l.b16 %v470
        %v1971 = vunpack.c.l.b16 %v471
        %v1972 = vunpack.c.l.b16 %v472
        %v1973 = vunpack.c.l.b16 %v473
        %v1974 = vunpack.c.l.b16 %v474
        %v1975 = vunpack.c.l.b16 %v475
        %v1976 = vunpack.c.l.b16 %v476
        %v1977 = vunpack.c.l.b16 %v477
        %v1978 = vunpack.c.l.b16 %v478
        %v1979 = vunpack.c.l.b16 %v479
        %v1980 = vunpack.c.l.b16 %v480
        %v1981 = vunpack.c.l.b16 %v481
        %v1982 = vunpack.c.l.b16 %v482
        %v1983 = vunpack.c.l.b16 %v483
        %v1984 = vunpack.c.l.b16 %v484
        %v1985 = vunpack.c.l.b16 %v485
        %v1986 = vunpack.c.l.b16 %v486
        %v1987 = vunpack.c.l.b16 %v487
        %v1988 = vunpack.c.l.b16 %v488
        %v1989 = vunpack.c.l.b16 %v489
        %v1990 = vunpack.c.l.b16 %v490
        %v1991 = vunpack.c.l.b16 %v491
        %v1992 = vpack.c.b16 %v1961, %v1960
        %v1993 = vpack.c.b16 %v1963, %v1962
        %v1994 = vpack.c.b16 %v1965, %v1964
        %v1995 = vpack.c.b16 %v1967, %v1966
        %v1996 = vpack.c.b16 %v1969, %v1968
        %v1997 = vpack.c.b16 %v1971, %v1970
        %v1998 = vpack.c.b16 %v1973, %v1972
        %v1999 = vpack.c.b16 %v1975, %v1974
        %v2000 = vpack.c.b16 %v1977, %v1976
        %v2001 = vpack.c.b16 %v1979, %v1978
        %v2002 = vpack.c.b16 %v1981, %v1980
        %v2003 = vpack.c.b16 %v1983, %v1982
        %v2004 = vpack.c.b16 %v1985, %v1984
        %v2005 = vpack.c.b16 %v1987, %v1986
        %v2006 = vpack.c.b16 %v1989, %v1988
        %v2007 = vpack.c.b16 %v1991, %v1990
        %2024 = vmatpush.bf16.msra.mxu0 %v1999
        %2025 = vmatpush.bf16.msra.mxu0 %v1998
        %2026 = vmatpush.bf16.msra.mxu0 %v1997
        %2027 = vmatpush.bf16.msra.mxu0 %v1996
        %2028 = vmatpush.bf16.msra.mxu0 %v1995
        %2029 = vmatpush.bf16.msra.mxu0 %v1994
        %2030 = vmatpush.bf16.msra.mxu0 %v1993
        %2031 = vmatpush.bf16.msra.mxu0 %v1992
        %2032 = vmatmul.bf16.gmra.mxu0 %v1896
        %v2033 = vpop.f32.mrf.mxu0
        %v2034 = vadd.f32 0.0, %v2033
        %v2035 = vpop.f32.mrf.mxu0
        %v2036 = vadd.f32 0.0, %v2035
        %2037 = vmatmul.bf16.gmra.mxu0 %v1898
        %v2038 = vpop.f32.mrf.mxu0
        %v2039 = vadd.f32 0.0, %v2038
        %v2040 = vpop.f32.mrf.mxu0
        %v2041 = vadd.f32 0.0, %v2040
        %2042 = vmatmul.bf16.gmra.mxu0 %v1900
        %v2043 = vpop.f32.mrf.mxu0
        %v2044 = vadd.f32 0.0, %v2043
        %v2045 = vpop.f32.mrf.mxu0
        %v2046 = vadd.f32 0.0, %v2045
        %2047 = vmatmul.bf16.gmra.mxu0 %v1902
        %v2048 = vpop.f32.mrf.mxu0
        %v2049 = vadd.f32 0.0, %v2048
        %v2050 = vpop.f32.mrf.mxu0
        %v2051 = vadd.f32 0.0, %v2050
        %2052 = vmatmul.bf16.gmra.mxu0 %v1904
        %v2053 = vpop.f32.mrf.mxu0
        %v2054 = vadd.f32 0.0, %v2053
        %v2055 = vpop.f32.mrf.mxu0
        %v2056 = vadd.f32 0.0, %v2055
        %2057 = vmatmul.bf16.gmra.mxu0 %v1906
        %v2058 = vpop.f32.mrf.mxu0
        %v2059 = vadd.f32 0.0, %v2058
        %v2060 = vpop.f32.mrf.mxu0
        %v2061 = vadd.f32 0.0, %v2060
        %2062 = vmatmul.bf16.gmra.mxu0 %v1908
        %v2063 = vpop.f32.mrf.mxu0
        %v2064 = vadd.f32 0.0, %v2063
        %v2065 = vpop.f32.mrf.mxu0
        %v2066 = vadd.f32 0.0, %v2065
        %2067 = vmatmul.bf16.gmra.mxu0 %v1910
        %v2068 = vpop.f32.mrf.mxu0
        %v2069 = vadd.f32 0.0, %v2068
        %v2070 = vpop.f32.mrf.mxu0
        %v2071 = vadd.f32 0.0, %v2070
        %2072 = vmatmul.bf16.gmra.mxu0 %v1912
        %v2073 = vpop.f32.mrf.mxu0
        %v2074 = vadd.f32 0.0, %v2073
        %v2075 = vpop.f32.mrf.mxu0
        %v2076 = vadd.f32 0.0, %v2075
        %2077 = vmatmul.bf16.gmra.mxu0 %v1914
        %v2078 = vpop.f32.mrf.mxu0
        %v2079 = vadd.f32 0.0, %v2078
        %v2080 = vpop.f32.mrf.mxu0
        %v2081 = vadd.f32 0.0, %v2080
        %2082 = vmatmul.bf16.gmra.mxu0 %v1916
        %v2083 = vpop.f32.mrf.mxu0
        %v2084 = vadd.f32 0.0, %v2083
        %v2085 = vpop.f32.mrf.mxu0
        %v2086 = vadd.f32 0.0, %v2085
        %2087 = vmatmul.bf16.gmra.mxu0 %v1918
        %v2088 = vpop.f32.mrf.mxu0
        %v2089 = vadd.f32 0.0, %v2088
        %v2090 = vpop.f32.mrf.mxu0
        %v2091 = vadd.f32 0.0, %v2090
        %2092 = vmatmul.bf16.gmra.mxu0 %v1920
        %v2093 = vpop.f32.mrf.mxu0
        %v2094 = vadd.f32 0.0, %v2093
        %v2095 = vpop.f32.mrf.mxu0
        %v2096 = vadd.f32 0.0, %v2095
        %2097 = vmatmul.bf16.gmra.mxu0 %v1922
        %v2098 = vpop.f32.mrf.mxu0
        %v2099 = vadd.f32 0.0, %v2098
        %v2100 = vpop.f32.mrf.mxu0
        %v2101 = vadd.f32 0.0, %v2100
        %2102 = vmatmul.bf16.gmra.mxu0 %v1924
        %v2103 = vpop.f32.mrf.mxu0
        %v2104 = vadd.f32 0.0, %v2103
        %v2105 = vpop.f32.mrf.mxu0
        %v2106 = vadd.f32 0.0, %v2105
        %2107 = vmatmul.bf16.gmra.mxu0 %v1926
        %v2108 = vpop.f32.mrf.mxu0
        %v2109 = vadd.f32 0.0, %v2108
        %v2110 = vpop.f32.mrf.mxu0
        %v2111 = vadd.f32 0.0, %v2110
        %2112 = vdwg.mxu0
        %2113 = vmatpush.bf16.msra.mxu0 %v2007
        %2114 = vmatpush.bf16.msra.mxu0 %v2006
        %2115 = vmatpush.bf16.msra.mxu0 %v2005
        %2116 = vmatpush.bf16.msra.mxu0 %v2004
        %2117 = vmatpush.bf16.msra.mxu0 %v2003
        %2118 = vmatpush.bf16.msra.mxu0 %v2002
        %2119 = vmatpush.bf16.msra.mxu0 %v2001
        %2120 = vmatpush.bf16.msra.mxu0 %v2000
        %2121 = vmatmul.bf16.gmra.mxu0 %v1897
        %v2122 = vpop.f32.mrf.mxu0
        %v2123 = vadd.f32 %v2034, %v2122
        %v2124 = vpop.f32.mrf.mxu0
        %v2125 = vadd.f32 %v2036, %v2124
        %2126 = vmatmul.bf16.gmra.mxu0 %v1899
        %v2127 = vpop.f32.mrf.mxu0
        %v2128 = vadd.f32 %v2039, %v2127
        %v2129 = vpop.f32.mrf.mxu0
        %v2130 = vadd.f32 %v2041, %v2129
        %2131 = vmatmul.bf16.gmra.mxu0 %v1901
        %v2132 = vpop.f32.mrf.mxu0
        %v2133 = vadd.f32 %v2044, %v2132
        %v2134 = vpop.f32.mrf.mxu0
        %v2135 = vadd.f32 %v2046, %v2134
        %2136 = vmatmul.bf16.gmra.mxu0 %v1903
        %v2137 = vpop.f32.mrf.mxu0
        %v2138 = vadd.f32 %v2049, %v2137
        %v2139 = vpop.f32.mrf.mxu0
        %v2140 = vadd.f32 %v2051, %v2139
        %2141 = vmatmul.bf16.gmra.mxu0 %v1905
        %v2142 = vpop.f32.mrf.mxu0
        %v2143 = vadd.f32 %v2054, %v2142
        %v2144 = vpop.f32.mrf.mxu0
        %v2145 = vadd.f32 %v2056, %v2144
        %2146 = vmatmul.bf16.gmra.mxu0 %v1907
        %v2147 = vpop.f32.mrf.mxu0
        %v2148 = vadd.f32 %v2059, %v2147
        %v2149 = vpop.f32.mrf.mxu0
        %v2150 = vadd.f32 %v2061, %v2149
        %2151 = vmatmul.bf16.gmra.mxu0 %v1909
        %v2152 = vpop.f32.mrf.mxu0
        %v2153 = vadd.f32 %v2064, %v2152
        %v2154 = vpop.f32.mrf.mxu0
        %v2155 = vadd.f32 %v2066, %v2154
        %2156 = vmatmul.bf16.gmra.mxu0 %v1911
        %v2157 = vpop.f32.mrf.mxu0
        %v2158 = vadd.f32 %v2069, %v2157
        %v2159 = vpop.f32.mrf.mxu0
        %v2160 = vadd.f32 %v2071, %v2159
        %2161 = vmatmul.bf16.gmra.mxu0 %v1913
        %v2162 = vpop.f32.mrf.mxu0
        %v2163 = vadd.f32 %v2074, %v2162
        %v2164 = vpop.f32.mrf.mxu0
        %v2165 = vadd.f32 %v2076, %v2164
        %2166 = vmatmul.bf16.gmra.mxu0 %v1915
        %v2167 = vpop.f32.mrf.mxu0
        %v2168 = vadd.f32 %v2079, %v2167
        %v2169 = vpop.f32.mrf.mxu0
        %v2170 = vadd.f32 %v2081, %v2169
        %2171 = vmatmul.bf16.gmra.mxu0 %v1917
        %v2172 = vpop.f32.mrf.mxu0
        %v2173 = vadd.f32 %v2084, %v2172
        %v2174 = vpop.f32.mrf.mxu0
        %v2175 = vadd.f32 %v2086, %v2174
        %2176 = vmatmul.bf16.gmra.mxu0 %v1919
        %v2177 = vpop.f32.mrf.mxu0
        %v2178 = vadd.f32 %v2089, %v2177
        %v2179 = vpop.f32.mrf.mxu0
        %v2180 = vadd.f32 %v2091, %v2179
        %2181 = vmatmul.bf16.gmra.mxu0 %v1921
        %v2182 = vpop.f32.mrf.mxu0
        %v2183 = vadd.f32 %v2094, %v2182
        %v2184 = vpop.f32.mrf.mxu0
        %v2185 = vadd.f32 %v2096, %v2184
        %2186 = vmatmul.bf16.gmra.mxu0 %v1923
        %v2187 = vpop.f32.mrf.mxu0
        %v2188 = vadd.f32 %v2099, %v2187
        %v2189 = vpop.f32.mrf.mxu0
        %v2190 = vadd.f32 %v2101, %v2189
        %2191 = vmatmul.bf16.gmra.mxu0 %v1925
        %v2192 = vpop.f32.mrf.mxu0
        %v2193 = vadd.f32 %v2104, %v2192
        %v2194 = vpop.f32.mrf.mxu0
        %v2195 = vadd.f32 %v2106, %v2194
        %2196 = vmatmul.bf16.gmra.mxu0 %v1927
        %v2197 = vpop.f32.mrf.mxu0
        %v2198 = vadd.f32 %v2109, %v2197
        %v2199 = vpop.f32.mrf.mxu0
        %v2200 = vadd.f32 %v2111, %v2199
        %2201 = vdwg.mxu0
        %2202 = vst.msk [vmem:[%s393] sm:$0xff] %vm661, %v2123
        %2203 = vst.msk [vmem:[%s393 + $0x8] sm:$0xff] %vm661, %v2125
        %2204 = vst.msk [vmem:[%s393 + $0x10] sm:$0xff] %vm661, %v2128
        %2205 = vst.msk [vmem:[%s393 + $0x18] sm:$0xff] %vm661, %v2130
        %2206 = vst.msk [vmem:[%s393 + $0x20] sm:$0xff] %vm661, %v2133
        %2207 = vst.msk [vmem:[%s393 + $0x28] sm:$0xff] %vm661, %v2135
        %2208 = vst.msk [vmem:[%s393 + $0x30] sm:$0xff] %vm661, %v2138
        %2209 = vst.msk [vmem:[%s393 + $0x38] sm:$0xff] %vm661, %v2140
        %2210 = vst.msk [vmem:[%s393 + $0x40] sm:$0xff] %vm661, %v2143
        %2211 = vst.msk [vmem:[%s393 + $0x48] sm:$0xff] %vm661, %v2145
        %2212 = vst.msk [vmem:[%s393 + $0x50] sm:$0xff] %vm661, %v2148
        %2213 = vst.msk [vmem:[%s393 + $0x58] sm:$0xff] %vm661, %v2150
        %2214 = vst.msk [vmem:[%s393 + $0x60] sm:$0xff] %vm661, %v2153
        %2215 = vst.msk [vmem:[%s393 + $0x68] sm:$0xff] %vm661, %v2155
        %2216 = vst.msk [vmem:[%s393 + $0x70] sm:$0xff] %vm661, %v2158
        %2217 = vst.msk [vmem:[%s393 + $0x78] sm:$0xff] %vm661, %v2160
        %2218 = vst.msk [vmem:[%s393 + $0x80] sm:$0xff] %vm661, %v2163
        %2219 = vst.msk [vmem:[%s393 + $0x88] sm:$0xff] %vm661, %v2165
        %2220 = vst.msk [vmem:[%s393 + $0x90] sm:$0xff] %vm661, %v2168
        %2221 = vst.msk [vmem:[%s393 + $0x98] sm:$0xff] %vm661, %v2170
        %2222 = vst.msk [vmem:[%s393 + $0xa0] sm:$0xff] %vm661, %v2173
        %2223 = vst.msk [vmem:[%s393 + $0xa8] sm:$0xff] %vm661, %v2175
        %2224 = vst.msk [vmem:[%s393 + $0xb0] sm:$0xff] %vm661, %v2178
        %2225 = vst.msk [vmem:[%s393 + $0xb8] sm:$0xff] %vm661, %v2180
        %2226 = vst.msk [vmem:[%s393 + $0xc0] sm:$0xff] %vm661, %v2183
        %2227 = vst.msk [vmem:[%s393 + $0xc8] sm:$0xff] %vm661, %v2185
        %2228 = vst.msk [vmem:[%s393 + $0xd0] sm:$0xff] %vm661, %v2188
        %2229 = vst.msk [vmem:[%s393 + $0xd8] sm:$0xff] %vm661, %v2190
        %2230 = vst.msk [vmem:[%s393 + $0xe0] sm:$0xff] %vm661, %v2193
        %2231 = vst.msk [vmem:[%s393 + $0xe8] sm:$0xff] %vm661, %v2195
        %2232 = vst.msk [vmem:[%s393 + $0xf0] sm:$0xff] %vm661, %v2198
        %2233 = vst.msk [vmem:[%s393 + $0xf8] sm:$0xff] %vm661, %v2200
        %s2234 = smul.u32 32, %s27
        %p2235 = scmp.lt.s32.totalorder %s25, 1
        %s2236 = scalar_select %p2235, %s25, 1
        %p2237 = scmp.lt.s32.totalorder %s26, 1
        %s2238 = scalar_select %p2237, %s26, 1
        %p2239 = scmp.lt.s32.totalorder %s2234, 31
        %s2240 = scalar_select %p2239, %s2234, 31
        %s2241 = smul.addr %s2238, 32
        %s2242 = sadd.s32 %s2240, %s2241
        %s2243 = smul.addr %s2236, 64
        %s2244 = sadd.s32 %s2242, %s2243
        %s2245 = smul.addr %s2244, 8
        %s2246 = scalar_lea.vmem %s4, %s2245
        %s2247 = sand.u32 %s193, 1
        %s2248 = scalar_lea.sflag [#allocation3], %s2247
        %s2249 = sand.u32 %s193, 1
        %s2250 = smul.addr %s2249, 512
        %s2251 = scalar_lea.vmem [#allocation2], %s2250
        // Predicated region
        $region37: #{tpu_custom_call.1} parent=35 // pred_check
          %p2252 = pneg %p173
        $region38: #{tpu_custom_call.1} parent=35 // pred_check_branch
          %2254 = sbr.rel (%p2252) target = $region40
        $region39: #{tpu_custom_call.1} parent=35 // pred_region
          %s2255 = smul.u32 32, %s27
        $region40: #{tpu_custom_call.1} parent=35 // pred_fallthru
          _
        // Predicated region
        $region41: #{tpu_custom_call.1} parent=35 // pred_check
          %p2256 = pneg %p203
        $region42: #{tpu_custom_call.1} parent=35 // pred_check_branch
          %2258 = sbr.rel (%p2256) target = $region44
        $region43: #{tpu_custom_call.1} parent=35 // pred_region
          %s2259 = smul.u32 32, %s27
          %2261 = vsyncadd %s2248, 0
          %s2262 = smul.addr %s2259, 2
          %s2263 = smul.addr %s26, 64
          %s2264 = sadd.s32 %s2262, %s2263
          %s2265 = smul.addr %s25, 128
          %s2266 = sadd.s32 %s2264, %s2265
          %s2267 = smul.addr %s2266, 8
          %s2268 = scalar_lea.hbm %s5, %s2267
          %s2269 = sshll.u32 %s2251, 4
          %s2270 = int_to_ptr.vmem [resolvable:$true] %s2269
          %s2271 = sshll.u32 %s2268, 4
          %s2272 = int_to_ptr.hbm [resolvable:$true] %s2271
          %2277 = dma.vmem_to_hbm [thread:$0]  %s2270, 8192, %s2272, %s2248, 256, 256, 16
        $region44: #{tpu_custom_call.1} parent=35 // pred_fallthru
          _
      $region36: #{tpu_custom_call.1} parent=5 // pred_fallthru
        _
      %p2278 = scmp.le.s32.totalorder 2, %s15
      // Predicated region
      $region45: #{tpu_custom_call.1} parent=5 // pred_check
        %p2279 = pneg %p2278
      $region46: #{tpu_custom_call.1} parent=5 // pred_check_branch
        %2281 = sbr.rel (%p2279) target = $region48
      $region47: #{tpu_custom_call.1} parent=5 // pred_region
        %s2282 = ssub.s32 %s15, 2
        // Predicated region
        $region49: #{tpu_custom_call.1} parent=47 // pred_check
          %p2283 = pneg %p179
        $region50: #{tpu_custom_call.1} parent=47 // pred_check_branch
          %2285 = sbr.rel (%p2283) target = $region52
        $region51: #{tpu_custom_call.1} parent=47 // pred_region
          %s2286 = smul.u32 32, %s30
          %p2287 = scmp.lt.s32.totalorder %s28, 1
          %s2288 = scalar_select %p2287, %s28, 1
          %p2289 = scmp.lt.s32.totalorder %s29, 1
          %s2290 = scalar_select %p2289, %s29, 1
          %p2291 = scmp.lt.s32.totalorder %s2286, 31
          %s2292 = scalar_select %p2291, %s2286, 31
          %s2293 = smul.addr %s2290, 32
          %s2294 = sadd.s32 %s2292, %s2293
          %s2295 = smul.addr %s2288, 64
          %s2296 = sadd.s32 %s2294, %s2295
          %s2297 = smul.addr %s2296, 8
          %s2298 = scalar_lea.vmem %s4, %s2297
        $region52: #{tpu_custom_call.1} parent=47 // pred_fallthru
          _
        // Predicated region
        $region53: #{tpu_custom_call.1} parent=47 // pred_check
          %p2299 = pneg %p209
        $region54: #{tpu_custom_call.1} parent=47 // pred_check_branch
          %2301 = sbr.rel (%p2299) target = $region56
        $region55: #{tpu_custom_call.1} parent=47 // pred_region
          %s2302 = sand.u32 %s194, 1
          %s2303 = scalar_lea.sflag [#allocation3], %s2302
          %s2304 = sand.u32 %s194, 1
          %s2305 = smul.addr %s2304, 512
          %s2306 = scalar_lea.vmem [#allocation2], %s2305
          %2308 = dma.done %s2303, 8192
        $region56: #{tpu_custom_call.1} parent=47 // pred_fallthru
          _
      $region48: #{tpu_custom_call.1} parent=5 // pred_fallthru
        _
    $region6: #{tpu_custom_call.1} parent=1 // loop_footer
      %s19 = sadd.s32 1, %s15
    $region7: #{tpu_custom_call.1} parent=1 // loop_footer_branch
      %14 = sbr.rel target = $region3
    $region8: #{tpu_custom_call.1} parent=1 // loop_exit
      _
    %2309 = vsyncpa [#allocation3], 1
    %s2310 = scalar_lea.sflag [#allocation3], 1
    %2311 = vsyncpa %s2310, 1

</llo_original>
